<compile_context>
chip_gen: v5e
topology: v5e:2x2
jax: 0.10.0
libtpu: 0.0.40
codegen_flags: <defaults>
</compile_context>

<pallas_src>
import functools
import math

import jax
import jax.numpy as jnp
from jax.experimental import pallas as pl
from jax.experimental.pallas import tpu as pltpu


def _round_up(v, m):
    return (v + m - 1) // m * m


def _pad2d(a, rows, cols):
    r, c = a.shape
    if r == rows and c == cols:
        return a
    return jnp.pad(a, ((0, rows - r), (0, cols - c)))


def _ffn_kernel(*refs, dropout_rate):
    """One (row-tile, H-chunk) grid step of Linear -> ReLU -> Linear -> Dropout.

    Grid = (row tiles, H chunks).  The H axis is a reduction: the second matmul
    accumulates into an f32 VMEM scratch; bias2 + dropout + the store only
    happen on the last H chunk.
    """
    if dropout_rate > 0.0:
        x_ref, w1_ref, b1_ref, w2_ref, b2_ref, bits_ref, o_ref, acc_ref = refs
    else:
        x_ref, w1_ref, b1_ref, w2_ref, b2_ref, o_ref, acc_ref = refs
        bits_ref = None

    k = pl.program_id(1)

    @pl.when(k == 0)
    def _():
        acc_ref[...] = jnp.zeros_like(acc_ref)

    # First matmul (bf16 operands, f32 accumulation on the MXU) + bias + ReLU.
    h = jnp.dot(x_ref[...], w1_ref[...], preferred_element_type=jnp.float32)
    h = jnp.maximum(h + b1_ref[...], 0.0)

    # Second matmul: accumulate this H-chunk's contribution in f32.
    acc_ref[...] += jnp.dot(h.astype(jnp.bfloat16), w2_ref[...],
                            preferred_element_type=jnp.float32)

    @pl.when(k == pl.num_programs(1) - 1)
    def _():
        y = acc_ref[...] + b2_ref[...]
        if dropout_rate > 0.0:
            # Integer-threshold dropout: keep with prob (1-p), scale by 1/(1-p).
            thresh = min(int(round(dropout_rate * 4294967296.0)), 4294967295)
            keep = bits_ref[...] >= jnp.uint32(thresh)
            y = jnp.where(keep, y * jnp.float32(1.0 / (1.0 - dropout_rate)),
                          jnp.float32(0.0))
        o_ref[...] = y.astype(o_ref.dtype)


def feed_forward(x, w1, b1, w2, b2, *, dropout_rate=0.15, key=None,
                 tm=256, th=512):
    """x: (B, T, C) float32; w1: (C, H); b1: (H,); w2: (H, C); b2: (C,).

    Returns (B, T, C) float32.  Training-mode dropout (zero w.p. p, survivors
    scaled by 1/(1-p)) is applied when dropout_rate > 0 using `key`.
    """
    B, T, C = x.shape
    H = w1.shape[1]
    assert w1.shape == (C, H) and w2.shape == (H, C)
    assert b1.shape == (H,) and b2.shape == (C,)
    assert tm % 8 == 0 and th % 128 == 0

    N = B * T
    C_pad = _round_up(C, 128)
    tm_eff = min(tm, _round_up(N, 8))          # clamp tile for tiny inputs
    N_pad = _round_up(N, tm_eff)
    th_eff = min(th, _round_up(H, 128))        # multiple of 128
    H_pad = _round_up(H, th_eff)

    # Pad to lane-dense / tile-aligned shapes (zero padding is exact: padded
    # input cols hit zero weight rows, padded hidden units are ReLU(0)=0 with
    # zero w2 rows, padded output cols are sliced off below).
    x2d = _pad2d(x.reshape(N, C), N_pad, C_pad).astype(jnp.bfloat16)
    w1p = _pad2d(w1, C_pad, H_pad).astype(jnp.bfloat16)
    w2p = _pad2d(w2, H_pad, C_pad).astype(jnp.bfloat16)
    b1p = _pad2d(b1.reshape(1, H), 1, H_pad).astype(jnp.float32)
    b2p = _pad2d(b2.reshape(1, C), 1, C_pad).astype(jnp.float32)

    grid = (N_pad // tm_eff, H_pad // th_eff)

    in_arrays = [x2d, w1p, b1p, w2p, b2p]
    in_specs = [
        pl.BlockSpec((tm_eff, C_pad), lambda i, k: (i, 0)),   # x tile (resident over k)
        pl.BlockSpec((C_pad, th_eff), lambda i, k: (0, k)),   # w1 chunk (streamed)
        pl.BlockSpec((1, th_eff),     lambda i, k: (0, k)),   # b1 chunk
        pl.BlockSpec((th_eff, C_pad), lambda i, k: (k, 0)),   # w2 chunk (streamed)
        pl.BlockSpec((1, C_pad),      lambda i, k: (0, 0)),   # b2
    ]

    if dropout_rate > 0.0:
        if key is None:
            key = jax.random.PRNGKey(0)
        # Uniform u32 bits for the dropout mask, generated host/XLA-side so the
        # kernel also runs under the CPU interpreter (pltpu.prng_* does not).
        bits = jax.random.bits(key, (N_pad, C_pad), dtype=jnp.uint32)
        in_arrays.append(bits)
        in_specs.append(pl.BlockSpec((tm_eff, C_pad), lambda i, k: (i, 0)))

    kernel = functools.partial(_ffn_kernel, dropout_rate=float(dropout_rate))

    out2d = pl.pallas_call(
        kernel,
        out_shape=jax.ShapeDtypeStruct((N_pad, C_pad), x.dtype),
        grid_spec=pltpu.PrefetchScalarGridSpec(
            num_scalar_prefetch=0,
            grid=grid,
            in_specs=in_specs,
            out_specs=pl.BlockSpec((tm_eff, C_pad), lambda i, k: (i, 0)),
            scratch_shapes=[pltpu.VMEM((tm_eff, C_pad), jnp.float32)],
        ),
        compiler_params=pltpu.CompilerParams(
            dimension_semantics=("parallel", "arbitrary"),
            vmem_limit_bytes=48 * 1024 * 1024,
        ),
    )(*in_arrays)

    return out2d[:N, :C].reshape(B, T, C)


def _init_linear(key, fan_in, fan_out):
    """PyTorch nn.Linear default init: U(-1/sqrt(fan_in), 1/sqrt(fan_in)).
    Weight returned already transposed to (fan_in, fan_out)."""
    kw, kb = jax.random.split(key)
    bound = 1.0 / math.sqrt(fan_in)
    w = jax.random.uniform(kw, (fan_in, fan_out), jnp.float32, -bound, bound)
    b = jax.random.uniform(kb, (fan_out,), jnp.float32, -bound, bound)
    return w, b


if __name__ == "__main__":
    # Module defaults: n_embd=384 (multiple of 128), hidden = 4*n_embd = 1536.
    B, T, n_embd = 2, 8, 384
    hidden = 4 * n_embd
    dropout = 0.15

    root = jax.random.PRNGKey(0)
    kx, k1, k2, kd = jax.random.split(root, 4)

    x = jax.random.normal(kx, (B, T, n_embd), jnp.float32)
    w1, b1 = _init_linear(k1, n_embd, hidden)
    w2, b2 = _init_linear(k2, hidden, n_embd)

    # --- Correctness of the matmul/ReLU path (dropout disabled). ---
    y_nodrop = feed_forward(x, w1, b1, w2, b2, dropout_rate=0.0)
    jax.block_until_ready(y_nodrop)

    f32 = jnp.float32
    xb = x.reshape(-1, n_embd).astype(jnp.bfloat16).astype(f32)
    w1b = w1.astype(jnp.bfloat16).astype(f32)
    w2b = w2.astype(jnp.bfloat16).astype(f32)
    h_ref = jnp.maximum(xb @ w1b + b1, 0.0).astype(jnp.bfloat16).astype(f32)
    y_ref = (h_ref @ w2b + b2).reshape(B, T, n_embd)
    assert jnp.allclose(y_nodrop, y_ref, atol=1e-3, rtol=1e-3), \
        "mismatch vs reference"

    # --- Full forward with training-mode dropout (p = 0.15). ---
    y = feed_forward(x, w1, b1, w2, b2, key=kd, dropout_rate=dropout)
    jax.block_until_ready(y)
    assert y.shape == (B, T, n_embd)
    zero_frac = float(jnp.mean((y == 0.0).astype(jnp.float32)))
    assert 0.05 < zero_frac < 0.30, f"unexpected dropout zero fraction {zero_frac}"

    print("KERNEL_OK")
</pallas_src>

<mosaic_0001>
module attributes {stable_mosaic.version = 11 : i64} {
  func.func @_ffn_kernel(%arg0: i32, %arg1: i32, %arg2: memref<16x384xbf16, #tpu.memory_space<vmem>>, %arg3: memref<384x512xbf16, #tpu.memory_space<vmem>>, %arg4: memref<1x512xf32, #tpu.memory_space<vmem>>, %arg5: memref<512x384xbf16, #tpu.memory_space<vmem>>, %arg6: memref<1x384xf32, #tpu.memory_space<vmem>>, %arg7: memref<16x384xf32, #tpu.memory_space<vmem>>, %arg8: memref<16x384xf32, #tpu.memory_space<vmem>>) attributes {dimension_semantics = [#tpu.dimension_semantics<parallel>, #tpu.dimension_semantics<arbitrary>], iteration_bounds = array<i64: 1, 3>, scalar_prefetch = 0 : i64, scratch_operands = 1 : i64, tpu.core_type = #tpu.core_type<tc>, window_params = [{transform_indices = @transform_0, window_bounds = array<i64: 16, 384>}, {transform_indices = @transform_1, window_bounds = array<i64: 384, 512>}, {transform_indices = @transform_2, window_bounds = array<i64: 1, 512>}, {transform_indices = @transform_3, window_bounds = array<i64: 512, 384>}, {pipeline_mode = #tpu.pipeline_mode<synchronous>, transform_indices = @transform_4, window_bounds = array<i64: 1, 384>}, {transform_indices = @transform_5, window_bounds = array<i64: 16, 384>}]} {
    %c0_i32 = arith.constant 0 : i32
    %0 = arith.cmpi eq, %arg1, %c0_i32 : i32
    %1 = arith.extui %0 : i1 to i32
    %c0_i32_0 = arith.constant 0 : i32
    %2 = arith.cmpi ne, %1, %c0_i32_0 : i32
    scf.if %2 {
      %cst_15 = arith.constant 0.000000e+00 : f32
      %20 = vector.broadcast %cst_15 : f32 to vector<16x384xf32>
      %c0_16 = arith.constant 0 : index
      %c0_17 = arith.constant 0 : index
      %21 = vector.load %arg8[%c0_16, %c0_17] : memref<16x384xf32, #tpu.memory_space<vmem>>, vector<16x384xf32>
      tpu.vector_store %arg8[%c0_16, %c0_17], %20 {strides = array<i32>} : memref<16x384xf32, #tpu.memory_space<vmem>>, vector<16x384xf32>,
    } else {
    }
    %c0 = arith.constant 0 : index
    %c0_1 = arith.constant 0 : index
    %3 = vector.load %arg2[%c0, %c0_1] : memref<16x384xbf16, #tpu.memory_space<vmem>>, vector<16x384xbf16>
    %c0_2 = arith.constant 0 : index
    %c0_3 = arith.constant 0 : index
    %4 = vector.load %arg3[%c0_2, %c0_3] : memref<384x512xbf16, #tpu.memory_space<vmem>>, vector<384x512xbf16>
    %cst = arith.constant dense<0.000000e+00> : vector<16x512xf32>
    %5 = tpu.matmul %3, %4, %cst {dimension_numbers = #tpu.dot_dimension_numbers<[1], [0], [0], [1], [0, 0, 1, 1], [], []>} : vector<16x384xbf16>, vector<384x512xbf16>, vector<16x512xf32> -> vector<16x512xf32>
    %c0_4 = arith.constant 0 : index
    %c0_5 = arith.constant 0 : index
    %6 = vector.load %arg4[%c0_4, %c0_5] : memref<1x512xf32, #tpu.memory_space<vmem>>, vector<1x512xf32>
    %7 = vector.broadcast %6 : vector<1x512xf32> to vector<16x512xf32>
    %8 = arith.addf %5, %7 : vector<16x512xf32>
    %cst_6 = arith.constant 0.000000e+00 : f32
    %9 = vector.broadcast %cst_6 : f32 to vector<16x512xf32>
    %10 = arith.maximumf %8, %9 : vector<16x512xf32>
    %c0_7 = arith.constant 0 : index
    %c0_8 = arith.constant 0 : index
    %11 = vector.load %arg8[%c0_7, %c0_8] : memref<16x384xf32, #tpu.memory_space<vmem>>, vector<16x384xf32>
    %12 = arith.truncf %10 : vector<16x512xf32> to vector<16x512xbf16>
    %c0_9 = arith.constant 0 : index
    %c0_10 = arith.constant 0 : index
    %13 = vector.load %arg5[%c0_9, %c0_10] : memref<512x384xbf16, #tpu.memory_space<vmem>>, vector<512x384xbf16>
    %cst_11 = arith.constant dense<0.000000e+00> : vector<16x384xf32>
    %14 = tpu.matmul %12, %13, %cst_11 {dimension_numbers = #tpu.dot_dimension_numbers<[1], [0], [0], [1], [0, 0, 1, 1], [], []>} : vector<16x512xbf16>, vector<512x384xbf16>, vector<16x384xf32> -> vector<16x384xf32>
    %15 = arith.addf %11, %14 : vector<16x384xf32>
    %c0_12 = arith.constant 0 : index
    %c0_13 = arith.constant 0 : index
    %16 = vector.load %arg8[%c0_12, %c0_13] : memref<16x384xf32, #tpu.memory_space<vmem>>, vector<16x384xf32>
    tpu.vector_store %arg8[%c0_12, %c0_13], %15 {strides = array<i32>} : memref<16x384xf32, #tpu.memory_space<vmem>>, vector<16x384xf32>,
    %c2_i32 = arith.constant 2 : i32
    %17 = arith.cmpi eq, %arg1, %c2_i32 : i32
    %18 = arith.extui %17 : i1 to i32
    %c0_i32_14 = arith.constant 0 : i32
    %19 = arith.cmpi ne, %18, %c0_i32_14 : i32
    scf.if %19 {
      %c0_15 = arith.constant 0 : index
      %c0_16 = arith.constant 0 : index
      %20 = vector.load %arg8[%c0_15, %c0_16] : memref<16x384xf32, #tpu.memory_space<vmem>>, vector<16x384xf32>
      %c0_17 = arith.constant 0 : index
      %c0_18 = arith.constant 0 : index
      %21 = vector.load %arg6[%c0_17, %c0_18] : memref<1x384xf32, #tpu.memory_space<vmem>>, vector<1x384xf32>
      %22 = vector.broadcast %21 : vector<1x384xf32> to vector<16x384xf32>
      %23 = arith.addf %20, %22 : vector<16x384xf32>
      %c0_19 = arith.constant 0 : index
      %c0_20 = arith.constant 0 : index
      %24 = vector.load %arg7[%c0_19, %c0_20] : memref<16x384xf32, #tpu.memory_space<vmem>>, vector<16x384xf32>
      tpu.vector_store %arg7[%c0_19, %c0_20], %23 {strides = array<i32>} : memref<16x384xf32, #tpu.memory_space<vmem>>, vector<16x384xf32>,
    } else {
    }
    return
  }
  func.func @transform_0(%arg0: i32, %arg1: i32) -> (i32, i32) {
    %c0_i32 = arith.constant 0 : i32
    %c0_i32_0 = arith.constant 0 : i32
    return %arg0, %c0_i32 : i32, i32
  }
  func.func @transform_1(%arg0: i32, %arg1: i32) -> (i32, i32) {
    %c0_i32 = arith.constant 0 : i32
    %c0_i32_0 = arith.constant 0 : i32
    return %c0_i32, %arg1 : i32, i32
  }
  func.func @transform_2(%arg0: i32, %arg1: i32) -> (i32, i32) {
    %c0_i32 = arith.constant 0 : i32
    %c0_i32_0 = arith.constant 0 : i32
    return %c0_i32, %arg1 : i32, i32
  }
  func.func @transform_3(%arg0: i32, %arg1: i32) -> (i32, i32) {
    %c0_i32 = arith.constant 0 : i32
    %c0_i32_0 = arith.constant 0 : i32
    return %arg1, %c0_i32 : i32, i32
  }
  func.func @transform_4(%arg0: i32, %arg1: i32) -> (i32, i32) {
    %c0_i32 = arith.constant 0 : i32
    %c0_i32_0 = arith.constant 0 : i32
    %c0_i32_1 = arith.constant 0 : i32
    return %c0_i32, %c0_i32_0 : i32, i32
  }
  func.func @transform_5(%arg0: i32, %arg1: i32) -> (i32, i32) {
    %c0_i32 = arith.constant 0 : i32
    %c0_i32_0 = arith.constant 0 : i32
    return %arg0, %c0_i32 : i32, i32
  }
}

</mosaic_0001>

<llo_original>
// kernel: tpu_custom_call.1
$region0: #{tpu_custom_call.1}
  #allocation0 [shape = 'u32[]', space=smem, size = 0x4, offset = 0x4, fixed_abs, tag = 'smem constant byte address 0x4 - core index']
  #allocation1 [shape = 'u32[72,128]{1,0:T(1,128)}', space=vmem, size = 0x9000, scoped, tag = 'internal scratch']
  #allocation2 [shape = 'f32[16,384]{1,0:T(8,128)}', space=vmem, size = 0x6000, scoped, tag = 'scratch operand']
  %s0 = inlined_call_operand.hbm [shape: bf16[16,384], index: 0, kind: input, shape index: {}]
  %s1 = inlined_call_operand.hbm [shape: bf16[384,1536], index: 1, kind: input, shape index: {}]
  %s2 = inlined_call_operand.hbm [shape: f32[1,1536], index: 2, kind: input, shape index: {}]
  %s3 = inlined_call_operand.hbm [shape: bf16[1536,384], index: 3, kind: input, shape index: {}]
  %s4 = inlined_call_operand.hbm [shape: f32[1,384], index: 4, kind: input, shape index: {}]
  %s5 = inlined_call_operand.hbm [shape: f32[16,384], index: 5, kind: output, shape index: {}]
  %s6 = sld [smem:[#allocation0]]
  $region81: #{tpu_custom_call.1} parent=0
    _
  %s8 = ssub.s32 1, %s6
  %s9 = scalar_select 0, %s8, %s6
  $region1: #{tpu_custom_call.1} parent=0
    #allocation3 [shape = 'u8[12288]{0}', space=vmem, size = 0x3000, scoped, tag = 'input window, operand 0, single buffered']
    #allocation4 [shape = 's32[2]{0}', space=sflag, size = 0x8, scoped, tag = 'scoped memory for tpu_custom_call.1']
    #allocation5 [shape = 's32[2]{0}', space=sflag, size = 0x8, scoped, tag = 'scoped memory for tpu_custom_call.1']
    #allocation6 [shape = 'u8[786432]{0}', space=vmem, size = 0xc0000, scoped, tag = 'input window, operand 1']
    #allocation7 [shape = 's32[2]{0}', space=sflag, size = 0x8, scoped, tag = 'scoped memory for tpu_custom_call.1']
    #allocation8 [shape = 'u8[4096]{0}', space=vmem, size = 0x1000, scoped, tag = 'input window, operand 2']
    #allocation9 [shape = 'u8[786432]{0}', space=vmem, size = 0xc0000, scoped, tag = 'input window, operand 3']
    #allocation10 [shape = 's32[2]{0}', space=sflag, size = 0x8, scoped, tag = 'scoped memory for tpu_custom_call.1']
    #allocation11 [shape = 'u8[1536]{0}', space=vmem, size = 0x800, scoped, tag = 'input window, operand 4, single buffered']
    #allocation12 [shape = 'u8[24576]{0}', space=vmem, size = 0x6000, scoped, tag = 'output window, operand 0, single buffered']
    %10 = vsyncpa [#allocation4], 0
    %11 = vsyncpa [#allocation7], 0
    %s12 = scalar_lea.sflag [#allocation7], 1
    %13 = vsyncpa %s12, 0
    %14 = vsyncpa [#allocation10], 0
    %s15 = scalar_lea.sflag [#allocation10], 1
    %16 = vsyncpa %s15, 0
    %17 = vsyncpa [#allocation5], 0
    loop: start=0, step=1, limit=5
    $region2: #{tpu_custom_call.1} parent=1 // loop_pre_header
      _
    $region3: #{tpu_custom_call.1} parent=1 // loop_header
      %s19 = sphi 0, %s23
      %p20 = scmp.ge.s32.totalorder %s19, 5
      %s26 = sphi 0, %s38
      %s27 = sphi 0, %s34
      %s28 = sphi 0, %s26
      %s29 = sphi 0, %s27
      %s30 = sphi 0, %s28
      %s31 = sphi 0, %s29
      %s41 = sphi 0, %s43
      %s44 = sphi 0, %s41
      %s45 = sphi 0, %s44
      %s61 = sphi 0, %s45
      %s67 = sphi 0, %s69
      %s70 = sphi 0, %s67
      %s71 = sphi 0, %s70
      %s87 = sphi 0, %s71
      %s93 = sphi 0, %s95
      %s96 = sphi 0, %s93
      %s97 = sphi 0, %s96
      %s113 = sphi 0, %s97
      %s119 = sphi 0, %s121
      %s122 = sphi 0, %s119
      %s123 = sphi 0, %s122
      %s139 = sphi 0, %s123
      %s143 = sphi 0, %s143
      %s145 = sphi 0, %s143
      %s146 = sphi 0, %s145
      %s160 = sphi 0, %s146
      %s166 = sphi 0, %s168
      %s169 = sphi 0, %s166
      %s170 = sphi 0, %s169
      %s186 = sphi 0, %s170
    $region4: #{tpu_custom_call.1} parent=1 // loop_header_branch
      %22 = sbr.rel (%p20) target = $region8
    $region5: #{tpu_custom_call.1} parent=1 // loop_body
      %s24 = ssub.s32 %s19, 1
      %s25 = ssub.s32 %s19, 2
      %s32 = sadd.s32 1, %s27
      %p33 = scmp.ge.s32.totalorder %s32, 3
      %s34 = scalar_select %p33, 0, %s32
      %s35 = sadd.s32 1, %s26
      %s36 = scalar_select %p33, %s35, %s26
      %p37 = scmp.ge.s32.totalorder %s36, 1
      %s38 = scalar_select %p37, 0, %s36
      %s39 = ssub.s32 %s26, %s38
      %p40 = scmp.eq.s32.totalorder %s39, 0
      %s42 = sadd.s32 %s41, 1
      %s43 = scalar_select %p40, %s41, %s42
      %p46 = pneg %p40
      %p47 = scmp.eq.s32.totalorder %s19, 2
      %p48 = por %p46, %p47
      %p49 = scmp.ne.s32.totalorder %s41, %s44
      %p50 = scmp.eq.s32.totalorder %s19, 0
      %p51 = por %p49, %p50
      %p52 = scmp.ne.s32.totalorder %s41, %s44
      %p53 = scmp.eq.s32.totalorder %s24, 2
      %p54 = por %p52, %p53
      %p55 = scmp.ne.s32.totalorder %s44, %s45
      %p56 = scmp.eq.s32.totalorder %s24, 0
      %p57 = por %p55, %p56
      %p58 = scmp.ne.s32.totalorder %s44, %s45
      %p59 = scmp.eq.s32.totalorder %s25, 2
      %p60 = por %p58, %p59
      %p62 = scmp.ne.s32.totalorder %s45, %s61
      %p63 = scmp.eq.s32.totalorder %s25, 0
      %p64 = por %p62, %p63
      %s65 = ssub.s32 %s27, %s34
      %p66 = scmp.eq.s32.totalorder %s65, 0
      %s68 = sadd.s32 %s67, 1
      %s69 = scalar_select %p66, %s67, %s68
      %p72 = pneg %p66
      %p73 = scmp.eq.s32.totalorder %s19, 2
      %p74 = por %p72, %p73
      %p75 = scmp.ne.s32.totalorder %s67, %s70
      %p76 = scmp.eq.s32.totalorder %s19, 0
      %p77 = por %p75, %p76
      %p78 = scmp.ne.s32.totalorder %s67, %s70
      %p79 = scmp.eq.s32.totalorder %s24, 2
      %p80 = por %p78, %p79
      %p81 = scmp.ne.s32.totalorder %s70, %s71
      %p82 = scmp.eq.s32.totalorder %s24, 0
      %p83 = por %p81, %p82
      %p84 = scmp.ne.s32.totalorder %s70, %s71
      %p85 = scmp.eq.s32.totalorder %s25, 2
      %p86 = por %p84, %p85
      %p88 = scmp.ne.s32.totalorder %s71, %s87
      %p89 = scmp.eq.s32.totalorder %s25, 0
      %p90 = por %p88, %p89
      %s91 = ssub.s32 %s27, %s34
      %p92 = scmp.eq.s32.totalorder %s91, 0
      %s94 = sadd.s32 %s93, 1
      %s95 = scalar_select %p92, %s93, %s94
      %p98 = pneg %p92
      %p99 = scmp.eq.s32.totalorder %s19, 2
      %p100 = por %p98, %p99
      %p101 = scmp.ne.s32.totalorder %s93, %s96
      %p102 = scmp.eq.s32.totalorder %s19, 0
      %p103 = por %p101, %p102
      %p104 = scmp.ne.s32.totalorder %s93, %s96
      %p105 = scmp.eq.s32.totalorder %s24, 2
      %p106 = por %p104, %p105
      %p107 = scmp.ne.s32.totalorder %s96, %s97
      %p108 = scmp.eq.s32.totalorder %s24, 0
      %p109 = por %p107, %p108
      %p110 = scmp.ne.s32.totalorder %s96, %s97
      %p111 = scmp.eq.s32.totalorder %s25, 2
      %p112 = por %p110, %p111
      %p114 = scmp.ne.s32.totalorder %s97, %s113
      %p115 = scmp.eq.s32.totalorder %s25, 0
      %p116 = por %p114, %p115
      %s117 = ssub.s32 %s27, %s34
      %p118 = scmp.eq.s32.totalorder %s117, 0
      %s120 = sadd.s32 %s119, 1
      %s121 = scalar_select %p118, %s119, %s120
      %p124 = pneg %p118
      %p125 = scmp.eq.s32.totalorder %s19, 2
      %p126 = por %p124, %p125
      %p127 = scmp.ne.s32.totalorder %s119, %s122
      %p128 = scmp.eq.s32.totalorder %s19, 0
      %p129 = por %p127, %p128
      %p130 = scmp.ne.s32.totalorder %s119, %s122
      %p131 = scmp.eq.s32.totalorder %s24, 2
      %p132 = por %p130, %p131
      %p133 = scmp.ne.s32.totalorder %s122, %s123
      %p134 = scmp.eq.s32.totalorder %s24, 0
      %p135 = por %p133, %p134
      %p136 = scmp.ne.s32.totalorder %s122, %s123
      %p137 = scmp.eq.s32.totalorder %s25, 2
      %p138 = por %p136, %p137
      %p140 = scmp.ne.s32.totalorder %s123, %s139
      %p141 = scmp.eq.s32.totalorder %s25, 0
      %p142 = por %p140, %p141
      %s144 = sadd.s32 %s143, 1
      %p147 = scmp.eq.s32.totalorder %s19, 2
      %p148 = scmp.ne.s32.totalorder %s143, %s145
      %p149 = scmp.eq.s32.totalorder %s19, 0
      %p150 = por %p148, %p149
      %p151 = scmp.ne.s32.totalorder %s143, %s145
      %p152 = scmp.eq.s32.totalorder %s24, 2
      %p153 = por %p151, %p152
      %p154 = scmp.ne.s32.totalorder %s145, %s146
      %p155 = scmp.eq.s32.totalorder %s24, 0
      %p156 = por %p154, %p155
      %p157 = scmp.ne.s32.totalorder %s145, %s146
      %p158 = scmp.eq.s32.totalorder %s25, 2
      %p159 = por %p157, %p158
      %p161 = scmp.ne.s32.totalorder %s146, %s160
      %p162 = scmp.eq.s32.totalorder %s25, 0
      %p163 = por %p161, %p162
      %s164 = ssub.s32 %s26, %s38
      %p165 = scmp.eq.s32.totalorder %s164, 0
      %s167 = sadd.s32 %s166, 1
      %s168 = scalar_select %p165, %s166, %s167
      %p171 = pneg %p165
      %p172 = scmp.eq.s32.totalorder %s19, 2
      %p173 = por %p171, %p172
      %p174 = scmp.ne.s32.totalorder %s166, %s169
      %p175 = scmp.eq.s32.totalorder %s19, 0
      %p176 = por %p174, %p175
      %p177 = scmp.ne.s32.totalorder %s166, %s169
      %p178 = scmp.eq.s32.totalorder %s24, 2
      %p179 = por %p177, %p178
      %p180 = scmp.ne.s32.totalorder %s169, %s170
      %p181 = scmp.eq.s32.totalorder %s24, 0
      %p182 = por %p180, %p181
      %p183 = scmp.ne.s32.totalorder %s169, %s170
      %p184 = scmp.eq.s32.totalorder %s25, 2
      %p185 = por %p183, %p184
      %p187 = scmp.ne.s32.totalorder %s170, %s186
      %p188 = scmp.eq.s32.totalorder %s25, 0
      %p189 = por %p187, %p188
      %p190 = scmp.le.s32.totalorder 1, %s19
      %p191 = scmp.lt.s32.totalorder %s19, 4
      %p192 = pnand %p190, %p191
      %p193 = pneg %p192
      // Predicated region
      $region9: #{tpu_custom_call.1} parent=5 // pred_check
        _
      $region10: #{tpu_custom_call.1} parent=5 // pred_check_branch
        %195 = sbr.rel (%p192) target = $region12
      $region11: #{tpu_custom_call.1} parent=5 // pred_region
        %s196 = ssub.s32 %s19, 1
        // Predicated region
        $region13: #{tpu_custom_call.1} parent=11 // pred_check
          %p197 = pneg %p57
        $region14: #{tpu_custom_call.1} parent=11 // pred_check_branch
          %199 = sbr.rel (%p197) target = $region16
        $region15: #{tpu_custom_call.1} parent=11 // pred_region
          %s200 = smul.u32 2, %s28
          %202 = vsyncadd [#allocation4], 0
          %s203 = smul.addr %s200, 3
          %s204 = smul.addr %s203, 4
          %s205 = scalar_lea.hbm %s0, %s204
          %s206 = sshll.u32 %s205, 4
          %s207 = int_to_ptr.hbm [resolvable:$true] %s206
          %s208 = sshll.u32 [#allocation3], 4
          %s209 = int_to_ptr.vmem [resolvable:$true] %s208
          %214 = dma.hbm_to_vmem [thread:$0]  %s207, 384, %s209, [#allocation4], 192, 192, 12
        $region16: #{tpu_custom_call.1} parent=11 // pred_fallthru
          _
        // Predicated region
        $region17: #{tpu_custom_call.1} parent=11 // pred_check
          %p215 = pneg %p156
        $region18: #{tpu_custom_call.1} parent=11 // pred_check_branch
          %217 = sbr.rel (%p215) target = $region20
        $region19: #{tpu_custom_call.1} parent=11 // pred_region
          %219 = vsyncadd [#allocation10], 0
          %s221 = sshll.u32 %s4, 4
          %s222 = int_to_ptr.hbm [resolvable:$true] %s221
          %s223 = sshll.u32 [#allocation11], 4
          %s224 = int_to_ptr.vmem [resolvable:$true] %s223
          %226 = dma.hbm_to_vmem [thread:$0]  %s222, 48, %s224, [#allocation10]
        $region20: #{tpu_custom_call.1} parent=11 // pred_fallthru
          _
      $region12: #{tpu_custom_call.1} parent=5 // pred_fallthru
        _
      %p227 = scmp.lt.s32.totalorder %s19, 3
      // Predicated region
      $region21: #{tpu_custom_call.1} parent=5 // pred_check
        %p228 = pneg %p227
      $region22: #{tpu_custom_call.1} parent=5 // pred_check_branch
        %230 = sbr.rel (%p228) target = $region24
      $region23: #{tpu_custom_call.1} parent=5 // pred_region
        // Predicated region
        $region25: #{tpu_custom_call.1} parent=23 // pred_check
          %p231 = pneg %p77
        $region26: #{tpu_custom_call.1} parent=23 // pred_check_branch
          %233 = sbr.rel (%p231) target = $region28
        $region27: #{tpu_custom_call.1} parent=23 // pred_region
          %s234 = sand.u32 %s19, 1
          %s235 = scalar_lea.sflag [#allocation7], %s234
          %s236 = sand.u32 %s67, 1
          %s237 = smul.addr %s236, 768
          %s238 = scalar_lea.vmem [#allocation6], %s237
          %s239 = smul.u32 4, %s27
          %241 = vsyncadd %s235, 0
          %s242 = smul.addr %s239, 4
          %s243 = scalar_lea.hbm %s1, %s242
          %s244 = sshll.u32 %s243, 4
          %s245 = int_to_ptr.hbm [resolvable:$true] %s244
          %s246 = sshll.u32 %s238, 4
          %s247 = int_to_ptr.vmem [resolvable:$true] %s246
          %252 = dma.hbm_to_vmem [thread:$0]  %s245, 12288, %s247, %s235, 768, 256, 16
        $region28: #{tpu_custom_call.1} parent=23 // pred_fallthru
          _
        // Predicated region
        $region29: #{tpu_custom_call.1} parent=23 // pred_check
          %p253 = pneg %p103
        $region30: #{tpu_custom_call.1} parent=23 // pred_check_branch
          %255 = sbr.rel (%p253) target = $region32
        $region31: #{tpu_custom_call.1} parent=23 // pred_region
          %s256 = sand.u32 %s19, 1
          %s257 = scalar_lea.sflag [#allocation7], %s256
          %s258 = sand.u32 %s93, 1
          %s259 = smul.addr %s258, 4
          %s260 = scalar_lea.vmem [#allocation8], %s259
          %s261 = smul.u32 4, %s27
          %263 = vsyncadd %s257, 0
          %s264 = scalar_lea.hbm %s2, %s261
          %s266 = sshll.u32 %s264, 4
          %s267 = int_to_ptr.hbm [resolvable:$true] %s266
          %s268 = sshll.u32 %s260, 4
          %s269 = int_to_ptr.vmem [resolvable:$true] %s268
          %271 = dma.hbm_to_vmem [thread:$0]  %s267, 64, %s269, %s257
        $region32: #{tpu_custom_call.1} parent=23 // pred_fallthru
          _
        // Predicated region
        $region33: #{tpu_custom_call.1} parent=23 // pred_check
          %p272 = pneg %p129
        $region34: #{tpu_custom_call.1} parent=23 // pred_check_branch
          %274 = sbr.rel (%p272) target = $region36
        $region35: #{tpu_custom_call.1} parent=23 // pred_region
          %s275 = sand.u32 %s19, 1
          %s276 = scalar_lea.sflag [#allocation10], %s275
          %s277 = sand.u32 %s119, 1
          %s278 = smul.addr %s277, 768
          %s279 = scalar_lea.vmem [#allocation9], %s278
          %s280 = smul.u32 64, %s27
          %282 = vsyncadd %s276, 0
          %s283 = smul.addr %s280, 3
          %s284 = smul.addr %s283, 4
          %s285 = scalar_lea.hbm %s3, %s284
          %s286 = sshll.u32 %s285, 4
          %s287 = int_to_ptr.hbm [resolvable:$true] %s286
          %s288 = sshll.u32 %s279, 4
          %s289 = int_to_ptr.vmem [resolvable:$true] %s288
          %294 = dma.hbm_to_vmem [thread:$0]  %s287, 12288, %s289, %s276, 192, 192, 12
        $region36: #{tpu_custom_call.1} parent=23 // pred_fallthru
          _
      $region24: #{tpu_custom_call.1} parent=5 // pred_fallthru
        _
      %p295 = scmp.le.s32.totalorder 1, %s19
      %p296 = scmp.lt.s32.totalorder %s19, 4
      %p297 = pnand %p295, %p296
      %p298 = pneg %p297
      // Predicated region
      $region37: #{tpu_custom_call.1} parent=5 // pred_check
        _
      $region38: #{tpu_custom_call.1} parent=5 // pred_check_branch
        %300 = sbr.rel (%p297) target = $region40
      $region39: #{tpu_custom_call.1} parent=5 // pred_region
        %s301 = ssub.s32 %s19, 1
        // Predicated region
        $region41: #{tpu_custom_call.1} parent=39 // pred_check
          %p302 = pneg %p57
        $region42: #{tpu_custom_call.1} parent=39 // pred_check_branch
          %304 = sbr.rel (%p302) target = $region44
        $region43: #{tpu_custom_call.1} parent=39 // pred_region
          %306 = dma.done [#allocation4], 384
        $region44: #{tpu_custom_call.1} parent=39 // pred_fallthru
          _
        %s307 = sand.u32 %s24, 1
        %s308 = scalar_lea.sflag [#allocation7], %s307
        %s309 = sand.u32 %s70, 1
        %s310 = smul.addr %s309, 768
        %s311 = scalar_lea.vmem [#allocation6], %s310
        // Predicated region
        $region45: #{tpu_custom_call.1} parent=39 // pred_check
          %p312 = pneg %p83
        $region46: #{tpu_custom_call.1} parent=39 // pred_check_branch
          %314 = sbr.rel (%p312) target = $region48
        $region47: #{tpu_custom_call.1} parent=39 // pred_region
          %316 = dma.done %s308, 12288
        $region48: #{tpu_custom_call.1} parent=39 // pred_fallthru
          _
        %s317 = sand.u32 %s24, 1
        %s318 = scalar_lea.sflag [#allocation7], %s317
        %s319 = sand.u32 %s96, 1
        %s320 = smul.addr %s319, 4
        %s321 = scalar_lea.vmem [#allocation8], %s320
        // Predicated region
        $region49: #{tpu_custom_call.1} parent=39 // pred_check
          %p322 = pneg %p109
        $region50: #{tpu_custom_call.1} parent=39 // pred_check_branch
          %324 = sbr.rel (%p322) target = $region52
        $region51: #{tpu_custom_call.1} parent=39 // pred_region
          %326 = dma.done %s318, 64
        $region52: #{tpu_custom_call.1} parent=39 // pred_fallthru
          _
        %s327 = sand.u32 %s24, 1
        %s328 = scalar_lea.sflag [#allocation10], %s327
        %s329 = sand.u32 %s122, 1
        %s330 = smul.addr %s329, 768
        %s331 = scalar_lea.vmem [#allocation9], %s330
        // Predicated region
        $region53: #{tpu_custom_call.1} parent=39 // pred_check
          %p332 = pneg %p135
        $region54: #{tpu_custom_call.1} parent=39 // pred_check_branch
          %334 = sbr.rel (%p332) target = $region56
        $region55: #{tpu_custom_call.1} parent=39 // pred_region
          %336 = dma.done %s328, 12288
        $region56: #{tpu_custom_call.1} parent=39 // pred_fallthru
          _
        // Predicated region
        $region57: #{tpu_custom_call.1} parent=39 // pred_check
          %p337 = pneg %p156
        $region58: #{tpu_custom_call.1} parent=39 // pred_check_branch
          %339 = sbr.rel (%p337) target = $region60
        $region59: #{tpu_custom_call.1} parent=39 // pred_region
          %341 = dma.done [#allocation10], 48
        $region60: #{tpu_custom_call.1} parent=39 // pred_fallthru
          _
        %p342 = pneg %p57
        %p343 = pneg %p54
        %s344 = sand.u32 %s24, 1
        %s345 = scalar_lea.sflag [#allocation7], %s344
        %s346 = sand.u32 %s70, 1
        %s347 = smul.addr %s346, 768
        %s348 = scalar_lea.vmem [#allocation6], %s347
        %p349 = pneg %p83
        %p350 = pneg %p80
        %s351 = sand.u32 %s24, 1
        %s352 = scalar_lea.sflag [#allocation7], %s351
        %s353 = sand.u32 %s96, 1
        %s354 = smul.addr %s353, 4
        %s355 = scalar_lea.vmem [#allocation8], %s354
        %p356 = pneg %p109
        %p357 = pneg %p106
        %s358 = sand.u32 %s24, 1
        %s359 = scalar_lea.sflag [#allocation10], %s358
        %s360 = sand.u32 %s122, 1
        %s361 = smul.addr %s360, 768
        %s362 = scalar_lea.vmem [#allocation9], %s361
        %p363 = pneg %p135
        %p364 = pneg %p132
        %p365 = pneg %p156
        %p366 = pneg %p153
        %p367 = pneg %p182
        %p368 = pneg %p179
        %s369 = smul.u32 2, %s28
        %s370 = smul.u32 4, %s29
        %s371 = smul.u32 4, %s29
        %s372 = smul.u32 64, %s29
        %s373 = smul.u32 2, %s28
        %p374 = scmp.eq.s32.totalorder %s29, 0
        // Predicated region
        $region61: #{tpu_custom_call.1} parent=39 // pred_check
          %p375 = pneg %p374
        $region62: #{tpu_custom_call.1} parent=39 // pred_check_branch
          %377 = sbr.rel (%p375) target = $region64
        $region63: #{tpu_custom_call.1} parent=39 // pred_region
          %378 = vst [vmem:[#allocation2] sm:$0xff] 0.0
          %379 = vst [vmem:[#allocation2 + $0x8] sm:$0xff] 0.0
          %380 = vst [vmem:[#allocation2 + $0x10] sm:$0xff] 0.0
          %381 = vst [vmem:[#allocation2 + $0x18] sm:$0xff] 0.0
          %382 = vst [vmem:[#allocation2 + $0x20] sm:$0xff] 0.0
          %383 = vst [vmem:[#allocation2 + $0x28] sm:$0xff] 0.0
        $region64: #{tpu_custom_call.1} parent=39 // pred_fallthru
          _
        %v384 = vld [vmem:[#allocation3] sm:$0xff]
        %v385 = vld [vmem:[#allocation3 + $0x8] sm:$0xf]
        %v386 = vld [vmem:[#allocation3 + $0xc] sm:$0xff]
        %v387 = vld [vmem:[#allocation3 + $0x14] sm:$0xf]
        %v388 = vld [vmem:[%s311] sm:$0xff]
        %v389 = vld [vmem:[%s311 + $0x8] sm:$0xff]
        %v390 = vld [vmem:[%s311 + $0x10] sm:$0xff]
        %v391 = vld [vmem:[%s311 + $0x18] sm:$0xff]
        %v392 = vld [vmem:[%s311 + $0x20] sm:$0xff]
        %v393 = vld [vmem:[%s311 + $0x28] sm:$0xff]
        %v394 = vld [vmem:[%s311 + $0x30] sm:$0xff]
        %v395 = vld [vmem:[%s311 + $0x38] sm:$0xff]
        %v396 = vld [vmem:[%s311 + $0x40] sm:$0xff]
        %v397 = vld [vmem:[%s311 + $0x48] sm:$0xff]
        %v398 = vld [vmem:[%s311 + $0x50] sm:$0xff]
        %v399 = vld [vmem:[%s311 + $0x58] sm:$0xff]
        %v400 = vld [vmem:[%s311 + $0x60] sm:$0xff]
        %v401 = vld [vmem:[%s311 + $0x68] sm:$0xff]
        %v402 = vld [vmem:[%s311 + $0x70] sm:$0xff]
        %v403 = vld [vmem:[%s311 + $0x78] sm:$0xff]
        %v404 = vld [vmem:[%s311 + $0x80] sm:$0xff]
        %v405 = vld [vmem:[%s311 + $0x88] sm:$0xff]
        %v406 = vld [vmem:[%s311 + $0x90] sm:$0xff]
        %v407 = vld [vmem:[%s311 + $0x98] sm:$0xff]
        %v408 = vld [vmem:[%s311 + $0xa0] sm:$0xff]
        %v409 = vld [vmem:[%s311 + $0xa8] sm:$0xff]
        %v410 = vld [vmem:[%s311 + $0xb0] sm:$0xff]
        %v411 = vld [vmem:[%s311 + $0xb8] sm:$0xff]
        %v412 = vld [vmem:[%s311 + $0xc0] sm:$0xff]
        %v413 = vld [vmem:[%s311 + $0xc8] sm:$0xff]
        %v414 = vld [vmem:[%s311 + $0xd0] sm:$0xff]
        %v415 = vld [vmem:[%s311 + $0xd8] sm:$0xff]
        %v416 = vld [vmem:[%s311 + $0xe0] sm:$0xff]
        %v417 = vld [vmem:[%s311 + $0xe8] sm:$0xff]
        %v418 = vld [vmem:[%s311 + $0xf0] sm:$0xff]
        %v419 = vld [vmem:[%s311 + $0xf8] sm:$0xff]
        %v420 = vld [vmem:[%s311 + $0x100] sm:$0xff]
        %v421 = vld [vmem:[%s311 + $0x108] sm:$0xff]
        %v422 = vld [vmem:[%s311 + $0x110] sm:$0xff]
        %v423 = vld [vmem:[%s311 + $0x118] sm:$0xff]
        %v424 = vld [vmem:[%s311 + $0x120] sm:$0xff]
        %v425 = vld [vmem:[%s311 + $0x128] sm:$0xff]
        %v426 = vld [vmem:[%s311 + $0x130] sm:$0xff]
        %v427 = vld [vmem:[%s311 + $0x138] sm:$0xff]
        %v428 = vld [vmem:[%s311 + $0x140] sm:$0xff]
        %v429 = vld [vmem:[%s311 + $0x148] sm:$0xff]
        %v430 = vld [vmem:[%s311 + $0x150] sm:$0xff]
        %v431 = vld [vmem:[%s311 + $0x158] sm:$0xff]
        %v432 = vld [vmem:[%s311 + $0x160] sm:$0xff]
        %v433 = vld [vmem:[%s311 + $0x168] sm:$0xff]
        %v434 = vld [vmem:[%s311 + $0x170] sm:$0xff]
        %v435 = vld [vmem:[%s311 + $0x178] sm:$0xff]
        %v436 = vld [vmem:[%s311 + $0x180] sm:$0xff]
        %v437 = vld [vmem:[%s311 + $0x188] sm:$0xff]
        %v438 = vld [vmem:[%s311 + $0x190] sm:$0xff]
        %v439 = vld [vmem:[%s311 + $0x198] sm:$0xff]
        %v440 = vld [vmem:[%s311 + $0x1a0] sm:$0xff]
        %v441 = vld [vmem:[%s311 + $0x1a8] sm:$0xff]
        %v442 = vld [vmem:[%s311 + $0x1b0] sm:$0xff]
        %v443 = vld [vmem:[%s311 + $0x1b8] sm:$0xff]
        %v444 = vld [vmem:[%s311 + $0x1c0] sm:$0xff]
        %v445 = vld [vmem:[%s311 + $0x1c8] sm:$0xff]
        %v446 = vld [vmem:[%s311 + $0x1d0] sm:$0xff]
        %v447 = vld [vmem:[%s311 + $0x1d8] sm:$0xff]
        %v448 = vld [vmem:[%s311 + $0x1e0] sm:$0xff]
        %v449 = vld [vmem:[%s311 + $0x1e8] sm:$0xff]
        %v450 = vld [vmem:[%s311 + $0x1f0] sm:$0xff]
        %v451 = vld [vmem:[%s311 + $0x1f8] sm:$0xff]
        %v452 = vld [vmem:[%s311 + $0x200] sm:$0xff]
        %v453 = vld [vmem:[%s311 + $0x208] sm:$0xff]
        %v454 = vld [vmem:[%s311 + $0x210] sm:$0xff]
        %v455 = vld [vmem:[%s311 + $0x218] sm:$0xff]
        %v456 = vld [vmem:[%s311 + $0x220] sm:$0xff]
        %v457 = vld [vmem:[%s311 + $0x228] sm:$0xff]
        %v458 = vld [vmem:[%s311 + $0x230] sm:$0xff]
        %v459 = vld [vmem:[%s311 + $0x238] sm:$0xff]
        %v460 = vld [vmem:[%s311 + $0x240] sm:$0xff]
        %v461 = vld [vmem:[%s311 + $0x248] sm:$0xff]
        %v462 = vld [vmem:[%s311 + $0x250] sm:$0xff]
        %v463 = vld [vmem:[%s311 + $0x258] sm:$0xff]
        %v464 = vld [vmem:[%s311 + $0x260] sm:$0xff]
        %v465 = vld [vmem:[%s311 + $0x268] sm:$0xff]
        %v466 = vld [vmem:[%s311 + $0x270] sm:$0xff]
        %v467 = vld [vmem:[%s311 + $0x278] sm:$0xff]
        %v468 = vld [vmem:[%s311 + $0x280] sm:$0xff]
        %v469 = vld [vmem:[%s311 + $0x288] sm:$0xff]
        %v470 = vld [vmem:[%s311 + $0x290] sm:$0xff]
        %v471 = vld [vmem:[%s311 + $0x298] sm:$0xff]
        %v472 = vld [vmem:[%s311 + $0x2a0] sm:$0xff]
        %v473 = vld [vmem:[%s311 + $0x2a8] sm:$0xff]
        %v474 = vld [vmem:[%s311 + $0x2b0] sm:$0xff]
        %v475 = vld [vmem:[%s311 + $0x2b8] sm:$0xff]
        %v476 = vld [vmem:[%s311 + $0x2c0] sm:$0xff]
        %v477 = vld [vmem:[%s311 + $0x2c8] sm:$0xff]
        %v478 = vld [vmem:[%s311 + $0x2d0] sm:$0xff]
        %v479 = vld [vmem:[%s311 + $0x2d8] sm:$0xff]
        %v480 = vld [vmem:[%s311 + $0x2e0] sm:$0xff]
        %v481 = vld [vmem:[%s311 + $0x2e8] sm:$0xff]
        %v482 = vld [vmem:[%s311 + $0x2f0] sm:$0xff]
        %v483 = vld [vmem:[%s311 + $0x2f8] sm:$0xff]
        %v484 = vld [vmem:[%s321] sm:$0xf]
        %v486 = vperm.slane %v484, 0
        %v487 = vperm.slane %v484, 1
        %v488 = vperm.slane %v484, 2
        %v489 = vperm.slane %v484, 3
        %v498 = vunpack.c.l.b16 %v384
        %v499 = vunpack.c.h.b16 %v384
        %v500 = vunpack.c.l.b16 %v385
        %v501 = vunpack.c.l.b16 %v386
        %v502 = vunpack.c.h.b16 %v386
        %v503 = vunpack.c.l.b16 %v387
        %v504 = vpack.c.b16 %v501, %v498
        %v505 = vpack.c.b16 %v502, %v499
        %v506 = vpack.c.b16 %v503, %v500
        %v606 = vunpack.c.l.b16 %v388
        %v607 = vunpack.c.h.b16 %v388
        %v608 = vunpack.c.l.b16 %v389
        %v609 = vunpack.c.h.b16 %v389
        %v610 = vunpack.c.l.b16 %v390
        %v611 = vunpack.c.h.b16 %v390
        %v612 = vunpack.c.l.b16 %v391
        %v613 = vunpack.c.h.b16 %v391
        %v614 = vunpack.c.l.b16 %v392
        %v615 = vunpack.c.h.b16 %v392
        %v616 = vunpack.c.l.b16 %v393
        %v617 = vunpack.c.h.b16 %v393
        %v618 = vunpack.c.l.b16 %v394
        %v619 = vunpack.c.h.b16 %v394
        %v620 = vunpack.c.l.b16 %v395
        %v621 = vunpack.c.h.b16 %v395
        %v622 = vunpack.c.l.b16 %v396
        %v623 = vunpack.c.h.b16 %v396
        %v624 = vunpack.c.l.b16 %v397
        %v625 = vunpack.c.h.b16 %v397
        %v626 = vunpack.c.l.b16 %v398
        %v627 = vunpack.c.h.b16 %v398
        %v628 = vunpack.c.l.b16 %v399
        %v629 = vunpack.c.h.b16 %v399
        %v630 = vunpack.c.l.b16 %v400
        %v631 = vunpack.c.h.b16 %v400
        %v632 = vunpack.c.l.b16 %v401
        %v633 = vunpack.c.h.b16 %v401
        %v634 = vunpack.c.l.b16 %v402
        %v635 = vunpack.c.h.b16 %v402
        %v636 = vunpack.c.l.b16 %v403
        %v637 = vunpack.c.h.b16 %v403
        %v638 = vunpack.c.l.b16 %v404
        %v639 = vunpack.c.h.b16 %v404
        %v640 = vunpack.c.l.b16 %v405
        %v641 = vunpack.c.h.b16 %v405
        %v642 = vunpack.c.l.b16 %v406
        %v643 = vunpack.c.h.b16 %v406
        %v644 = vunpack.c.l.b16 %v407
        %v645 = vunpack.c.h.b16 %v407
        %v646 = vunpack.c.l.b16 %v408
        %v647 = vunpack.c.h.b16 %v408
        %v648 = vunpack.c.l.b16 %v409
        %v649 = vunpack.c.h.b16 %v409
        %v650 = vunpack.c.l.b16 %v410
        %v651 = vunpack.c.h.b16 %v410
        %v652 = vunpack.c.l.b16 %v411
        %v653 = vunpack.c.h.b16 %v411
        %v654 = vunpack.c.l.b16 %v412
        %v655 = vunpack.c.h.b16 %v412
        %v656 = vunpack.c.l.b16 %v413
        %v657 = vunpack.c.h.b16 %v413
        %v658 = vunpack.c.l.b16 %v414
        %v659 = vunpack.c.h.b16 %v414
        %v660 = vunpack.c.l.b16 %v415
        %v661 = vunpack.c.h.b16 %v415
        %v662 = vunpack.c.l.b16 %v416
        %v663 = vunpack.c.h.b16 %v416
        %v664 = vunpack.c.l.b16 %v417
        %v665 = vunpack.c.h.b16 %v417
        %v666 = vunpack.c.l.b16 %v418
        %v667 = vunpack.c.h.b16 %v418
        %v668 = vunpack.c.l.b16 %v419
        %v669 = vunpack.c.h.b16 %v419
        %v670 = vunpack.c.l.b16 %v420
        %v671 = vunpack.c.h.b16 %v420
        %v672 = vunpack.c.l.b16 %v421
        %v673 = vunpack.c.h.b16 %v421
        %v674 = vunpack.c.l.b16 %v422
        %v675 = vunpack.c.h.b16 %v422
        %v676 = vunpack.c.l.b16 %v423
        %v677 = vunpack.c.h.b16 %v423
        %v678 = vunpack.c.l.b16 %v424
        %v679 = vunpack.c.h.b16 %v424
        %v680 = vunpack.c.l.b16 %v425
        %v681 = vunpack.c.h.b16 %v425
        %v682 = vunpack.c.l.b16 %v426
        %v683 = vunpack.c.h.b16 %v426
        %v684 = vunpack.c.l.b16 %v427
        %v685 = vunpack.c.h.b16 %v427
        %v686 = vunpack.c.l.b16 %v428
        %v687 = vunpack.c.h.b16 %v428
        %v688 = vunpack.c.l.b16 %v429
        %v689 = vunpack.c.h.b16 %v429
        %v690 = vunpack.c.l.b16 %v430
        %v691 = vunpack.c.h.b16 %v430
        %v692 = vunpack.c.l.b16 %v431
        %v693 = vunpack.c.h.b16 %v431
        %v694 = vunpack.c.l.b16 %v432
        %v695 = vunpack.c.h.b16 %v432
        %v696 = vunpack.c.l.b16 %v433
        %v697 = vunpack.c.h.b16 %v433
        %v698 = vunpack.c.l.b16 %v434
        %v699 = vunpack.c.h.b16 %v434
        %v700 = vunpack.c.l.b16 %v435
        %v701 = vunpack.c.h.b16 %v435
        %v702 = vunpack.c.l.b16 %v436
        %v703 = vunpack.c.h.b16 %v436
        %v704 = vunpack.c.l.b16 %v437
        %v705 = vunpack.c.h.b16 %v437
        %v706 = vunpack.c.l.b16 %v438
        %v707 = vunpack.c.h.b16 %v438
        %v708 = vunpack.c.l.b16 %v439
        %v709 = vunpack.c.h.b16 %v439
        %v710 = vunpack.c.l.b16 %v440
        %v711 = vunpack.c.h.b16 %v440
        %v712 = vunpack.c.l.b16 %v441
        %v713 = vunpack.c.h.b16 %v441
        %v714 = vunpack.c.l.b16 %v442
        %v715 = vunpack.c.h.b16 %v442
        %v716 = vunpack.c.l.b16 %v443
        %v717 = vunpack.c.h.b16 %v443
        %v718 = vunpack.c.l.b16 %v444
        %v719 = vunpack.c.h.b16 %v444
        %v720 = vunpack.c.l.b16 %v445
        %v721 = vunpack.c.h.b16 %v445
        %v722 = vunpack.c.l.b16 %v446
        %v723 = vunpack.c.h.b16 %v446
        %v724 = vunpack.c.l.b16 %v447
        %v725 = vunpack.c.h.b16 %v447
        %v726 = vunpack.c.l.b16 %v448
        %v727 = vunpack.c.h.b16 %v448
        %v728 = vunpack.c.l.b16 %v449
        %v729 = vunpack.c.h.b16 %v449
        %v730 = vunpack.c.l.b16 %v450
        %v731 = vunpack.c.h.b16 %v450
        %v732 = vunpack.c.l.b16 %v451
        %v733 = vunpack.c.h.b16 %v451
        %v734 = vunpack.c.l.b16 %v452
        %v735 = vunpack.c.h.b16 %v452
        %v736 = vunpack.c.l.b16 %v453
        %v737 = vunpack.c.h.b16 %v453
        %v738 = vunpack.c.l.b16 %v454
        %v739 = vunpack.c.h.b16 %v454
        %v740 = vunpack.c.l.b16 %v455
        %v741 = vunpack.c.h.b16 %v455
        %v742 = vunpack.c.l.b16 %v456
        %v743 = vunpack.c.h.b16 %v456
        %v744 = vunpack.c.l.b16 %v457
        %v745 = vunpack.c.h.b16 %v457
        %v746 = vunpack.c.l.b16 %v458
        %v747 = vunpack.c.h.b16 %v458
        %v748 = vunpack.c.l.b16 %v459
        %v749 = vunpack.c.h.b16 %v459
        %v750 = vunpack.c.l.b16 %v460
        %v751 = vunpack.c.h.b16 %v460
        %v752 = vunpack.c.l.b16 %v461
        %v753 = vunpack.c.h.b16 %v461
        %v754 = vunpack.c.l.b16 %v462
        %v755 = vunpack.c.h.b16 %v462
        %v756 = vunpack.c.l.b16 %v463
        %v757 = vunpack.c.h.b16 %v463
        %v758 = vunpack.c.l.b16 %v464
        %v759 = vunpack.c.h.b16 %v464
        %v760 = vunpack.c.l.b16 %v465
        %v761 = vunpack.c.h.b16 %v465
        %v762 = vunpack.c.l.b16 %v466
        %v763 = vunpack.c.h.b16 %v466
        %v764 = vunpack.c.l.b16 %v467
        %v765 = vunpack.c.h.b16 %v467
        %v766 = vunpack.c.l.b16 %v468
        %v767 = vunpack.c.h.b16 %v468
        %v768 = vunpack.c.l.b16 %v469
        %v769 = vunpack.c.h.b16 %v469
        %v770 = vunpack.c.l.b16 %v470
        %v771 = vunpack.c.h.b16 %v470
        %v772 = vunpack.c.l.b16 %v471
        %v773 = vunpack.c.h.b16 %v471
        %v774 = vunpack.c.l.b16 %v472
        %v775 = vunpack.c.h.b16 %v472
        %v776 = vunpack.c.l.b16 %v473
        %v777 = vunpack.c.h.b16 %v473
        %v778 = vunpack.c.l.b16 %v474
        %v779 = vunpack.c.h.b16 %v474
        %v780 = vunpack.c.l.b16 %v475
        %v781 = vunpack.c.h.b16 %v475
        %v782 = vunpack.c.l.b16 %v476
        %v783 = vunpack.c.h.b16 %v476
        %v784 = vunpack.c.l.b16 %v477
        %v785 = vunpack.c.h.b16 %v477
        %v786 = vunpack.c.l.b16 %v478
        %v787 = vunpack.c.h.b16 %v478
        %v788 = vunpack.c.l.b16 %v479
        %v789 = vunpack.c.h.b16 %v479
        %v790 = vunpack.c.l.b16 %v480
        %v791 = vunpack.c.h.b16 %v480
        %v792 = vunpack.c.l.b16 %v481
        %v793 = vunpack.c.h.b16 %v481
        %v794 = vunpack.c.l.b16 %v482
        %v795 = vunpack.c.h.b16 %v482
        %v796 = vunpack.c.l.b16 %v483
        %v797 = vunpack.c.h.b16 %v483
        %v798 = vpack.c.b16 %v610, %v606
        %v799 = vpack.c.b16 %v611, %v607
        %v800 = vpack.c.b16 %v612, %v608
        %v801 = vpack.c.b16 %v613, %v609
        %v802 = vpack.c.b16 %v618, %v614
        %v803 = vpack.c.b16 %v619, %v615
        %v804 = vpack.c.b16 %v620, %v616
        %v805 = vpack.c.b16 %v621, %v617
        %v806 = vpack.c.b16 %v626, %v622
        %v807 = vpack.c.b16 %v627, %v623
        %v808 = vpack.c.b16 %v628, %v624
        %v809 = vpack.c.b16 %v629, %v625
        %v810 = vpack.c.b16 %v634, %v630
        %v811 = vpack.c.b16 %v635, %v631
        %v812 = vpack.c.b16 %v636, %v632
        %v813 = vpack.c.b16 %v637, %v633
        %v814 = vpack.c.b16 %v642, %v638
        %v815 = vpack.c.b16 %v643, %v639
        %v816 = vpack.c.b16 %v644, %v640
        %v817 = vpack.c.b16 %v645, %v641
        %v818 = vpack.c.b16 %v650, %v646
        %v819 = vpack.c.b16 %v651, %v647
        %v820 = vpack.c.b16 %v652, %v648
        %v821 = vpack.c.b16 %v653, %v649
        %v822 = vpack.c.b16 %v658, %v654
        %v823 = vpack.c.b16 %v659, %v655
        %v824 = vpack.c.b16 %v660, %v656
        %v825 = vpack.c.b16 %v661, %v657
        %v826 = vpack.c.b16 %v666, %v662
        %v827 = vpack.c.b16 %v667, %v663
        %v828 = vpack.c.b16 %v668, %v664
        %v829 = vpack.c.b16 %v669, %v665
        %v830 = vpack.c.b16 %v674, %v670
        %v831 = vpack.c.b16 %v675, %v671
        %v832 = vpack.c.b16 %v676, %v672
        %v833 = vpack.c.b16 %v677, %v673
        %v834 = vpack.c.b16 %v682, %v678
        %v835 = vpack.c.b16 %v683, %v679
        %v836 = vpack.c.b16 %v684, %v680
        %v837 = vpack.c.b16 %v685, %v681
        %v838 = vpack.c.b16 %v690, %v686
        %v839 = vpack.c.b16 %v691, %v687
        %v840 = vpack.c.b16 %v692, %v688
        %v841 = vpack.c.b16 %v693, %v689
        %v842 = vpack.c.b16 %v698, %v694
        %v843 = vpack.c.b16 %v699, %v695
        %v844 = vpack.c.b16 %v700, %v696
        %v845 = vpack.c.b16 %v701, %v697
        %v846 = vpack.c.b16 %v706, %v702
        %v847 = vpack.c.b16 %v707, %v703
        %v848 = vpack.c.b16 %v708, %v704
        %v849 = vpack.c.b16 %v709, %v705
        %v850 = vpack.c.b16 %v714, %v710
        %v851 = vpack.c.b16 %v715, %v711
        %v852 = vpack.c.b16 %v716, %v712
        %v853 = vpack.c.b16 %v717, %v713
        %v854 = vpack.c.b16 %v722, %v718
        %v855 = vpack.c.b16 %v723, %v719
        %v856 = vpack.c.b16 %v724, %v720
        %v857 = vpack.c.b16 %v725, %v721
        %v858 = vpack.c.b16 %v730, %v726
        %v859 = vpack.c.b16 %v731, %v727
        %v860 = vpack.c.b16 %v732, %v728
        %v861 = vpack.c.b16 %v733, %v729
        %v862 = vpack.c.b16 %v738, %v734
        %v863 = vpack.c.b16 %v739, %v735
        %v864 = vpack.c.b16 %v740, %v736
        %v865 = vpack.c.b16 %v741, %v737
        %v866 = vpack.c.b16 %v746, %v742
        %v867 = vpack.c.b16 %v747, %v743
        %v868 = vpack.c.b16 %v748, %v744
        %v869 = vpack.c.b16 %v749, %v745
        %v870 = vpack.c.b16 %v754, %v750
        %v871 = vpack.c.b16 %v755, %v751
        %v872 = vpack.c.b16 %v756, %v752
        %v873 = vpack.c.b16 %v757, %v753
        %v874 = vpack.c.b16 %v762, %v758
        %v875 = vpack.c.b16 %v763, %v759
        %v876 = vpack.c.b16 %v764, %v760
        %v877 = vpack.c.b16 %v765, %v761
        %v878 = vpack.c.b16 %v770, %v766
        %v879 = vpack.c.b16 %v771, %v767
        %v880 = vpack.c.b16 %v772, %v768
        %v881 = vpack.c.b16 %v773, %v769
        %v882 = vpack.c.b16 %v778, %v774
        %v883 = vpack.c.b16 %v779, %v775
        %v884 = vpack.c.b16 %v780, %v776
        %v885 = vpack.c.b16 %v781, %v777
        %v886 = vpack.c.b16 %v786, %v782
        %v887 = vpack.c.b16 %v787, %v783
        %v888 = vpack.c.b16 %v788, %v784
        %v889 = vpack.c.b16 %v789, %v785
        %v890 = vpack.c.b16 %v794, %v790
        %v891 = vpack.c.b16 %v795, %v791
        %v892 = vpack.c.b16 %v796, %v792
        %v893 = vpack.c.b16 %v797, %v793
        %990 = vmatpush.bf16.msra.mxu0 %v826
        %991 = vmatpush.bf16.msra.mxu0 %v822
        %992 = vmatpush.bf16.msra.mxu0 %v818
        %993 = vmatpush.bf16.msra.mxu0 %v814
        %994 = vmatpush.bf16.msra.mxu0 %v810
        %995 = vmatpush.bf16.msra.mxu0 %v806
        %996 = vmatpush.bf16.msra.mxu0 %v802
        %997 = vmatpush.bf16.msra.mxu0 %v798
        %998 = vmatmul.bf16.gmra.mxu0 %v504
        %v999 = vpop.f32.mrf.mxu0
        %v1000 = vadd.f32 %v486, %v999
        %v1001 = vpop.f32.mrf.mxu0
        %v1002 = vadd.f32 %v486, %v1001
        %1003 = vdwg.mxu0
        %1004 = vmatpush.bf16.msra.mxu0 %v858
        %1005 = vmatpush.bf16.msra.mxu0 %v854
        %1006 = vmatpush.bf16.msra.mxu0 %v850
        %1007 = vmatpush.bf16.msra.mxu0 %v846
        %1008 = vmatpush.bf16.msra.mxu0 %v842
        %1009 = vmatpush.bf16.msra.mxu0 %v838
        %1010 = vmatpush.bf16.msra.mxu0 %v834
        %1011 = vmatpush.bf16.msra.mxu0 %v830
        %1012 = vmatmul.bf16.gmra.mxu0 %v505
        %v1013 = vpop.f32.mrf.mxu0
        %v1014 = vadd.f32 %v1000, %v1013
        %v1015 = vpop.f32.mrf.mxu0
        %v1016 = vadd.f32 %v1002, %v1015
        %1017 = vdwg.mxu0
        %1018 = vmatpush.bf16.msra.mxu0 %v890
        %1019 = vmatpush.bf16.msra.mxu0 %v886
        %1020 = vmatpush.bf16.msra.mxu0 %v882
        %1021 = vmatpush.bf16.msra.mxu0 %v878
        %1022 = vmatpush.bf16.msra.mxu0 %v874
        %1023 = vmatpush.bf16.msra.mxu0 %v870
        %1024 = vmatpush.bf16.msra.mxu0 %v866
        %1025 = vmatpush.bf16.msra.mxu0 %v862
        %1026 = vmatmul.bf16.gmra.mxu0 %v506
        %v1027 = vpop.f32.mrf.mxu0
        %v1028 = vadd.f32 %v1014, %v1027
        %v1029 = vpop.f32.mrf.mxu0
        %v1030 = vadd.f32 %v1016, %v1029
        %1031 = vdwg.mxu0
        %1032 = vmatpush.bf16.msra.mxu0 %v827
        %1033 = vmatpush.bf16.msra.mxu0 %v823
        %1034 = vmatpush.bf16.msra.mxu0 %v819
        %1035 = vmatpush.bf16.msra.mxu0 %v815
        %1036 = vmatpush.bf16.msra.mxu0 %v811
        %1037 = vmatpush.bf16.msra.mxu0 %v807
        %1038 = vmatpush.bf16.msra.mxu0 %v803
        %1039 = vmatpush.bf16.msra.mxu0 %v799
        %1040 = vmatmul.bf16.gmra.mxu0 %v504
        %v1041 = vpop.f32.mrf.mxu0
        %v1042 = vadd.f32 %v487, %v1041
        %v1043 = vpop.f32.mrf.mxu0
        %v1044 = vadd.f32 %v487, %v1043
        %1045 = vdwg.mxu0
        %1046 = vmatpush.bf16.msra.mxu0 %v859
        %1047 = vmatpush.bf16.msra.mxu0 %v855
        %1048 = vmatpush.bf16.msra.mxu0 %v851
        %1049 = vmatpush.bf16.msra.mxu0 %v847
        %1050 = vmatpush.bf16.msra.mxu0 %v843
        %1051 = vmatpush.bf16.msra.mxu0 %v839
        %1052 = vmatpush.bf16.msra.mxu0 %v835
        %1053 = vmatpush.bf16.msra.mxu0 %v831
        %1054 = vmatmul.bf16.gmra.mxu0 %v505
        %v1055 = vpop.f32.mrf.mxu0
        %v1056 = vadd.f32 %v1042, %v1055
        %v1057 = vpop.f32.mrf.mxu0
        %v1058 = vadd.f32 %v1044, %v1057
        %1059 = vdwg.mxu0
        %1060 = vmatpush.bf16.msra.mxu0 %v891
        %1061 = vmatpush.bf16.msra.mxu0 %v887
        %1062 = vmatpush.bf16.msra.mxu0 %v883
        %1063 = vmatpush.bf16.msra.mxu0 %v879
        %1064 = vmatpush.bf16.msra.mxu0 %v875
        %1065 = vmatpush.bf16.msra.mxu0 %v871
        %1066 = vmatpush.bf16.msra.mxu0 %v867
        %1067 = vmatpush.bf16.msra.mxu0 %v863
        %1068 = vmatmul.bf16.gmra.mxu0 %v506
        %v1069 = vpop.f32.mrf.mxu0
        %v1070 = vadd.f32 %v1056, %v1069
        %v1071 = vpop.f32.mrf.mxu0
        %v1072 = vadd.f32 %v1058, %v1071
        %1073 = vdwg.mxu0
        %1074 = vmatpush.bf16.msra.mxu0 %v828
        %1075 = vmatpush.bf16.msra.mxu0 %v824
        %1076 = vmatpush.bf16.msra.mxu0 %v820
        %1077 = vmatpush.bf16.msra.mxu0 %v816
        %1078 = vmatpush.bf16.msra.mxu0 %v812
        %1079 = vmatpush.bf16.msra.mxu0 %v808
        %1080 = vmatpush.bf16.msra.mxu0 %v804
        %1081 = vmatpush.bf16.msra.mxu0 %v800
        %1082 = vmatmul.bf16.gmra.mxu0 %v504
        %v1083 = vpop.f32.mrf.mxu0
        %v1084 = vadd.f32 %v488, %v1083
        %v1085 = vpop.f32.mrf.mxu0
        %v1086 = vadd.f32 %v488, %v1085
        %1087 = vdwg.mxu0
        %1088 = vmatpush.bf16.msra.mxu0 %v860
        %1089 = vmatpush.bf16.msra.mxu0 %v856
        %1090 = vmatpush.bf16.msra.mxu0 %v852
        %1091 = vmatpush.bf16.msra.mxu0 %v848
        %1092 = vmatpush.bf16.msra.mxu0 %v844
        %1093 = vmatpush.bf16.msra.mxu0 %v840
        %1094 = vmatpush.bf16.msra.mxu0 %v836
        %1095 = vmatpush.bf16.msra.mxu0 %v832
        %1096 = vmatmul.bf16.gmra.mxu0 %v505
        %v1097 = vpop.f32.mrf.mxu0
        %v1098 = vadd.f32 %v1084, %v1097
        %v1099 = vpop.f32.mrf.mxu0
        %v1100 = vadd.f32 %v1086, %v1099
        %1101 = vdwg.mxu0
        %1102 = vmatpush.bf16.msra.mxu0 %v892
        %1103 = vmatpush.bf16.msra.mxu0 %v888
        %1104 = vmatpush.bf16.msra.mxu0 %v884
        %1105 = vmatpush.bf16.msra.mxu0 %v880
        %1106 = vmatpush.bf16.msra.mxu0 %v876
        %1107 = vmatpush.bf16.msra.mxu0 %v872
        %1108 = vmatpush.bf16.msra.mxu0 %v868
        %1109 = vmatpush.bf16.msra.mxu0 %v864
        %1110 = vmatmul.bf16.gmra.mxu0 %v506
        %v1111 = vpop.f32.mrf.mxu0
        %v1112 = vadd.f32 %v1098, %v1111
        %v1113 = vpop.f32.mrf.mxu0
        %v1114 = vadd.f32 %v1100, %v1113
        %1115 = vdwg.mxu0
        %1116 = vmatpush.bf16.msra.mxu0 %v829
        %1117 = vmatpush.bf16.msra.mxu0 %v825
        %1118 = vmatpush.bf16.msra.mxu0 %v821
        %1119 = vmatpush.bf16.msra.mxu0 %v817
        %1120 = vmatpush.bf16.msra.mxu0 %v813
        %1121 = vmatpush.bf16.msra.mxu0 %v809
        %1122 = vmatpush.bf16.msra.mxu0 %v805
        %1123 = vmatpush.bf16.msra.mxu0 %v801
        %1124 = vmatmul.bf16.gmra.mxu0 %v504
        %v1125 = vpop.f32.mrf.mxu0
        %v1126 = vadd.f32 %v489, %v1125
        %v1127 = vpop.f32.mrf.mxu0
        %v1128 = vadd.f32 %v489, %v1127
        %1129 = vdwg.mxu0
        %1130 = vmatpush.bf16.msra.mxu0 %v861
        %1131 = vmatpush.bf16.msra.mxu0 %v857
        %1132 = vmatpush.bf16.msra.mxu0 %v853
        %1133 = vmatpush.bf16.msra.mxu0 %v849
        %1134 = vmatpush.bf16.msra.mxu0 %v845
        %1135 = vmatpush.bf16.msra.mxu0 %v841
        %1136 = vmatpush.bf16.msra.mxu0 %v837
        %1137 = vmatpush.bf16.msra.mxu0 %v833
        %1138 = vmatmul.bf16.gmra.mxu0 %v505
        %v1139 = vpop.f32.mrf.mxu0
        %v1140 = vadd.f32 %v1126, %v1139
        %v1141 = vpop.f32.mrf.mxu0
        %v1142 = vadd.f32 %v1128, %v1141
        %1143 = vdwg.mxu0
        %1144 = vmatpush.bf16.msra.mxu0 %v893
        %1145 = vmatpush.bf16.msra.mxu0 %v889
        %1146 = vmatpush.bf16.msra.mxu0 %v885
        %1147 = vmatpush.bf16.msra.mxu0 %v881
        %1148 = vmatpush.bf16.msra.mxu0 %v877
        %1149 = vmatpush.bf16.msra.mxu0 %v873
        %1150 = vmatpush.bf16.msra.mxu0 %v869
        %1151 = vmatpush.bf16.msra.mxu0 %v865
        %1152 = vmatmul.bf16.gmra.mxu0 %v506
        %v1153 = vpop.f32.mrf.mxu0
        %v1154 = vadd.f32 %v1140, %v1153
        %v1155 = vpop.f32.mrf.mxu0
        %v1156 = vadd.f32 %v1142, %v1155
        %1157 = vdwg.mxu0
        %v1158 = vmax.f32 %v1028, 0.0
        %v1159 = vmax.f32 %v1070, 0.0
        %v1160 = vmax.f32 %v1112, 0.0
        %v1161 = vmax.f32 %v1154, 0.0
        %v1162 = vmax.f32 %v1030, 0.0
        %v1163 = vmax.f32 %v1072, 0.0
        %v1164 = vmax.f32 %v1114, 0.0
        %v1165 = vmax.f32 %v1156, 0.0
        %v1166 = vld [vmem:[#allocation2] sm:$0xff]
        %v1167 = vld [vmem:[#allocation2 + $0x8] sm:$0xff]
        %v1168 = vld [vmem:[#allocation2 + $0x10] sm:$0xff]
        %v1169 = vld [vmem:[#allocation2 + $0x18] sm:$0xff]
        %v1170 = vld [vmem:[#allocation2 + $0x20] sm:$0xff]
        %v1171 = vld [vmem:[#allocation2 + $0x28] sm:$0xff]
        %v1172 = vpack.c.bf16 %v1162, %v1158
        %v1173 = vpack.c.bf16 %v1163, %v1159
        %v1174 = vpack.c.bf16 %v1164, %v1160
        %v1175 = vpack.c.bf16 %v1165, %v1161
        %v1176 = vld [vmem:[%s331] sm:$0xff]
        %v1177 = vld [vmem:[%s331 + $0x8] sm:$0xf]
        %v1178 = vld [vmem:[%s331 + $0xc] sm:$0xff]
        %v1179 = vld [vmem:[%s331 + $0x14] sm:$0xf]
        %v1180 = vld [vmem:[%s331 + $0x18] sm:$0xff]
        %v1181 = vld [vmem:[%s331 + $0x20] sm:$0xf]
        %v1182 = vld [vmem:[%s331 + $0x24] sm:$0xff]
        %v1183 = vld [vmem:[%s331 + $0x2c] sm:$0xf]
        %v1184 = vld [vmem:[%s331 + $0x30] sm:$0xff]
        %v1185 = vld [vmem:[%s331 + $0x38] sm:$0xf]
        %v1186 = vld [vmem:[%s331 + $0x3c] sm:$0xff]
        %v1187 = vld [vmem:[%s331 + $0x44] sm:$0xf]
        %v1188 = vld [vmem:[%s331 + $0x48] sm:$0xff]
        %v1189 = vld [vmem:[%s331 + $0x50] sm:$0xf]
        %v1190 = vld [vmem:[%s331 + $0x54] sm:$0xff]
        %v1191 = vld [vmem:[%s331 + $0x5c] sm:$0xf]
        %v1192 = vld [vmem:[%s331 + $0x60] sm:$0xff]
        %v1193 = vld [vmem:[%s331 + $0x68] sm:$0xf]
        %v1194 = vld [vmem:[%s331 + $0x6c] sm:$0xff]
        %v1195 = vld [vmem:[%s331 + $0x74] sm:$0xf]
        %v1196 = vld [vmem:[%s331 + $0x78] sm:$0xff]
        %v1197 = vld [vmem:[%s331 + $0x80] sm:$0xf]
        %v1198 = vld [vmem:[%s331 + $0x84] sm:$0xff]
        %v1199 = vld [vmem:[%s331 + $0x8c] sm:$0xf]
        %v1200 = vld [vmem:[%s331 + $0x90] sm:$0xff]
        %v1201 = vld [vmem:[%s331 + $0x98] sm:$0xf]
        %v1202 = vld [vmem:[%s331 + $0x9c] sm:$0xff]
        %v1203 = vld [vmem:[%s331 + $0xa4] sm:$0xf]
        %v1204 = vld [vmem:[%s331 + $0xa8] sm:$0xff]
        %v1205 = vld [vmem:[%s331 + $0xb0] sm:$0xf]
        %v1206 = vld [vmem:[%s331 + $0xb4] sm:$0xff]
        %v1207 = vld [vmem:[%s331 + $0xbc] sm:$0xf]
        %v1208 = vld [vmem:[%s331 + $0xc0] sm:$0xff]
        %v1209 = vld [vmem:[%s331 + $0xc8] sm:$0xf]
        %v1210 = vld [vmem:[%s331 + $0xcc] sm:$0xff]
        %v1211 = vld [vmem:[%s331 + $0xd4] sm:$0xf]
        %v1212 = vld [vmem:[%s331 + $0xd8] sm:$0xff]
        %v1213 = vld [vmem:[%s331 + $0xe0] sm:$0xf]
        %v1214 = vld [vmem:[%s331 + $0xe4] sm:$0xff]
        %v1215 = vld [vmem:[%s331 + $0xec] sm:$0xf]
        %v1216 = vld [vmem:[%s331 + $0xf0] sm:$0xff]
        %v1217 = vld [vmem:[%s331 + $0xf8] sm:$0xf]
        %v1218 = vld [vmem:[%s331 + $0xfc] sm:$0xff]
        %v1219 = vld [vmem:[%s331 + $0x104] sm:$0xf]
        %v1220 = vld [vmem:[%s331 + $0x108] sm:$0xff]
        %v1221 = vld [vmem:[%s331 + $0x110] sm:$0xf]
        %v1222 = vld [vmem:[%s331 + $0x114] sm:$0xff]
        %v1223 = vld [vmem:[%s331 + $0x11c] sm:$0xf]
        %v1224 = vld [vmem:[%s331 + $0x120] sm:$0xff]
        %v1225 = vld [vmem:[%s331 + $0x128] sm:$0xf]
        %v1226 = vld [vmem:[%s331 + $0x12c] sm:$0xff]
        %v1227 = vld [vmem:[%s331 + $0x134] sm:$0xf]
        %v1228 = vld [vmem:[%s331 + $0x138] sm:$0xff]
        %v1229 = vld [vmem:[%s331 + $0x140] sm:$0xf]
        %v1230 = vld [vmem:[%s331 + $0x144] sm:$0xff]
        %v1231 = vld [vmem:[%s331 + $0x14c] sm:$0xf]
        %v1232 = vld [vmem:[%s331 + $0x150] sm:$0xff]
        %v1233 = vld [vmem:[%s331 + $0x158] sm:$0xf]
        %v1234 = vld [vmem:[%s331 + $0x15c] sm:$0xff]
        %v1235 = vld [vmem:[%s331 + $0x164] sm:$0xf]
        %v1236 = vld [vmem:[%s331 + $0x168] sm:$0xff]
        %v1237 = vld [vmem:[%s331 + $0x170] sm:$0xf]
        %v1238 = vld [vmem:[%s331 + $0x174] sm:$0xff]
        %v1239 = vld [vmem:[%s331 + $0x17c] sm:$0xf]
        %v1240 = vld [vmem:[%s331 + $0x180] sm:$0xff]
        %v1241 = vld [vmem:[%s331 + $0x188] sm:$0xf]
        %v1242 = vld [vmem:[%s331 + $0x18c] sm:$0xff]
        %v1243 = vld [vmem:[%s331 + $0x194] sm:$0xf]
        %v1244 = vld [vmem:[%s331 + $0x198] sm:$0xff]
        %v1245 = vld [vmem:[%s331 + $0x1a0] sm:$0xf]
        %v1246 = vld [vmem:[%s331 + $0x1a4] sm:$0xff]
        %v1247 = vld [vmem:[%s331 + $0x1ac] sm:$0xf]
        %v1248 = vld [vmem:[%s331 + $0x1b0] sm:$0xff]
        %v1249 = vld [vmem:[%s331 + $0x1b8] sm:$0xf]
        %v1250 = vld [vmem:[%s331 + $0x1bc] sm:$0xff]
        %v1251 = vld [vmem:[%s331 + $0x1c4] sm:$0xf]
        %v1252 = vld [vmem:[%s331 + $0x1c8] sm:$0xff]
        %v1253 = vld [vmem:[%s331 + $0x1d0] sm:$0xf]
        %v1254 = vld [vmem:[%s331 + $0x1d4] sm:$0xff]
        %v1255 = vld [vmem:[%s331 + $0x1dc] sm:$0xf]
        %v1256 = vld [vmem:[%s331 + $0x1e0] sm:$0xff]
        %v1257 = vld [vmem:[%s331 + $0x1e8] sm:$0xf]
        %v1258 = vld [vmem:[%s331 + $0x1ec] sm:$0xff]
        %v1259 = vld [vmem:[%s331 + $0x1f4] sm:$0xf]
        %v1260 = vld [vmem:[%s331 + $0x1f8] sm:$0xff]
        %v1261 = vld [vmem:[%s331 + $0x200] sm:$0xf]
        %v1262 = vld [vmem:[%s331 + $0x204] sm:$0xff]
        %v1263 = vld [vmem:[%s331 + $0x20c] sm:$0xf]
        %v1264 = vld [vmem:[%s331 + $0x210] sm:$0xff]
        %v1265 = vld [vmem:[%s331 + $0x218] sm:$0xf]
        %v1266 = vld [vmem:[%s331 + $0x21c] sm:$0xff]
        %v1267 = vld [vmem:[%s331 + $0x224] sm:$0xf]
        %v1268 = vld [vmem:[%s331 + $0x228] sm:$0xff]
        %v1269 = vld [vmem:[%s331 + $0x230] sm:$0xf]
        %v1270 = vld [vmem:[%s331 + $0x234] sm:$0xff]
        %v1271 = vld [vmem:[%s331 + $0x23c] sm:$0xf]
        %v1272 = vld [vmem:[%s331 + $0x240] sm:$0xff]
        %v1273 = vld [vmem:[%s331 + $0x248] sm:$0xf]
        %v1274 = vld [vmem:[%s331 + $0x24c] sm:$0xff]
        %v1275 = vld [vmem:[%s331 + $0x254] sm:$0xf]
        %v1276 = vld [vmem:[%s331 + $0x258] sm:$0xff]
        %v1277 = vld [vmem:[%s331 + $0x260] sm:$0xf]
        %v1278 = vld [vmem:[%s331 + $0x264] sm:$0xff]
        %v1279 = vld [vmem:[%s331 + $0x26c] sm:$0xf]
        %v1280 = vld [vmem:[%s331 + $0x270] sm:$0xff]
        %v1281 = vld [vmem:[%s331 + $0x278] sm:$0xf]
        %v1282 = vld [vmem:[%s331 + $0x27c] sm:$0xff]
        %v1283 = vld [vmem:[%s331 + $0x284] sm:$0xf]
        %v1284 = vld [vmem:[%s331 + $0x288] sm:$0xff]
        %v1285 = vld [vmem:[%s331 + $0x290] sm:$0xf]
        %v1286 = vld [vmem:[%s331 + $0x294] sm:$0xff]
        %v1287 = vld [vmem:[%s331 + $0x29c] sm:$0xf]
        %v1288 = vld [vmem:[%s331 + $0x2a0] sm:$0xff]
        %v1289 = vld [vmem:[%s331 + $0x2a8] sm:$0xf]
        %v1290 = vld [vmem:[%s331 + $0x2ac] sm:$0xff]
        %v1291 = vld [vmem:[%s331 + $0x2b4] sm:$0xf]
        %v1292 = vld [vmem:[%s331 + $0x2b8] sm:$0xff]
        %v1293 = vld [vmem:[%s331 + $0x2c0] sm:$0xf]
        %v1294 = vld [vmem:[%s331 + $0x2c4] sm:$0xff]
        %v1295 = vld [vmem:[%s331 + $0x2cc] sm:$0xf]
        %v1296 = vld [vmem:[%s331 + $0x2d0] sm:$0xff]
        %v1297 = vld [vmem:[%s331 + $0x2d8] sm:$0xf]
        %v1298 = vld [vmem:[%s331 + $0x2dc] sm:$0xff]
        %v1299 = vld [vmem:[%s331 + $0x2e4] sm:$0xf]
        %v1300 = vld [vmem:[%s331 + $0x2e8] sm:$0xff]
        %v1301 = vld [vmem:[%s331 + $0x2f0] sm:$0xf]
        %v1302 = vld [vmem:[%s331 + $0x2f4] sm:$0xff]
        %v1303 = vld [vmem:[%s331 + $0x2fc] sm:$0xf]
        %v1432 = vunpack.c.l.b16 %v1176
        %v1433 = vunpack.c.h.b16 %v1176
        %v1434 = vunpack.c.l.b16 %v1177
        %v1435 = vunpack.c.l.b16 %v1178
        %v1436 = vunpack.c.h.b16 %v1178
        %v1437 = vunpack.c.l.b16 %v1179
        %v1438 = vunpack.c.l.b16 %v1180
        %v1439 = vunpack.c.h.b16 %v1180
        %v1440 = vunpack.c.l.b16 %v1181
        %v1441 = vunpack.c.l.b16 %v1182
        %v1442 = vunpack.c.h.b16 %v1182
        %v1443 = vunpack.c.l.b16 %v1183
        %v1444 = vunpack.c.l.b16 %v1184
        %v1445 = vunpack.c.h.b16 %v1184
        %v1446 = vunpack.c.l.b16 %v1185
        %v1447 = vunpack.c.l.b16 %v1186
        %v1448 = vunpack.c.h.b16 %v1186
        %v1449 = vunpack.c.l.b16 %v1187
        %v1450 = vunpack.c.l.b16 %v1188
        %v1451 = vunpack.c.h.b16 %v1188
        %v1452 = vunpack.c.l.b16 %v1189
        %v1453 = vunpack.c.l.b16 %v1190
        %v1454 = vunpack.c.h.b16 %v1190
        %v1455 = vunpack.c.l.b16 %v1191
        %v1456 = vunpack.c.l.b16 %v1192
        %v1457 = vunpack.c.h.b16 %v1192
        %v1458 = vunpack.c.l.b16 %v1193
        %v1459 = vunpack.c.l.b16 %v1194
        %v1460 = vunpack.c.h.b16 %v1194
        %v1461 = vunpack.c.l.b16 %v1195
        %v1462 = vunpack.c.l.b16 %v1196
        %v1463 = vunpack.c.h.b16 %v1196
        %v1464 = vunpack.c.l.b16 %v1197
        %v1465 = vunpack.c.l.b16 %v1198
        %v1466 = vunpack.c.h.b16 %v1198
        %v1467 = vunpack.c.l.b16 %v1199
        %v1468 = vunpack.c.l.b16 %v1200
        %v1469 = vunpack.c.h.b16 %v1200
        %v1470 = vunpack.c.l.b16 %v1201
        %v1471 = vunpack.c.l.b16 %v1202
        %v1472 = vunpack.c.h.b16 %v1202
        %v1473 = vunpack.c.l.b16 %v1203
        %v1474 = vunpack.c.l.b16 %v1204
        %v1475 = vunpack.c.h.b16 %v1204
        %v1476 = vunpack.c.l.b16 %v1205
        %v1477 = vunpack.c.l.b16 %v1206
        %v1478 = vunpack.c.h.b16 %v1206
        %v1479 = vunpack.c.l.b16 %v1207
        %v1480 = vunpack.c.l.b16 %v1208
        %v1481 = vunpack.c.h.b16 %v1208
        %v1482 = vunpack.c.l.b16 %v1209
        %v1483 = vunpack.c.l.b16 %v1210
        %v1484 = vunpack.c.h.b16 %v1210
        %v1485 = vunpack.c.l.b16 %v1211
        %v1486 = vunpack.c.l.b16 %v1212
        %v1487 = vunpack.c.h.b16 %v1212
        %v1488 = vunpack.c.l.b16 %v1213
        %v1489 = vunpack.c.l.b16 %v1214
        %v1490 = vunpack.c.h.b16 %v1214
        %v1491 = vunpack.c.l.b16 %v1215
        %v1492 = vunpack.c.l.b16 %v1216
        %v1493 = vunpack.c.h.b16 %v1216
        %v1494 = vunpack.c.l.b16 %v1217
        %v1495 = vunpack.c.l.b16 %v1218
        %v1496 = vunpack.c.h.b16 %v1218
        %v1497 = vunpack.c.l.b16 %v1219
        %v1498 = vunpack.c.l.b16 %v1220
        %v1499 = vunpack.c.h.b16 %v1220
        %v1500 = vunpack.c.l.b16 %v1221
        %v1501 = vunpack.c.l.b16 %v1222
        %v1502 = vunpack.c.h.b16 %v1222
        %v1503 = vunpack.c.l.b16 %v1223
        %v1504 = vunpack.c.l.b16 %v1224
        %v1505 = vunpack.c.h.b16 %v1224
        %v1506 = vunpack.c.l.b16 %v1225
        %v1507 = vunpack.c.l.b16 %v1226
        %v1508 = vunpack.c.h.b16 %v1226
        %v1509 = vunpack.c.l.b16 %v1227
        %v1510 = vunpack.c.l.b16 %v1228
        %v1511 = vunpack.c.h.b16 %v1228
        %v1512 = vunpack.c.l.b16 %v1229
        %v1513 = vunpack.c.l.b16 %v1230
        %v1514 = vunpack.c.h.b16 %v1230
        %v1515 = vunpack.c.l.b16 %v1231
        %v1516 = vunpack.c.l.b16 %v1232
        %v1517 = vunpack.c.h.b16 %v1232
        %v1518 = vunpack.c.l.b16 %v1233
        %v1519 = vunpack.c.l.b16 %v1234
        %v1520 = vunpack.c.h.b16 %v1234
        %v1521 = vunpack.c.l.b16 %v1235
        %v1522 = vunpack.c.l.b16 %v1236
        %v1523 = vunpack.c.h.b16 %v1236
        %v1524 = vunpack.c.l.b16 %v1237
        %v1525 = vunpack.c.l.b16 %v1238
        %v1526 = vunpack.c.h.b16 %v1238
        %v1527 = vunpack.c.l.b16 %v1239
        %v1528 = vunpack.c.l.b16 %v1240
        %v1529 = vunpack.c.h.b16 %v1240
        %v1530 = vunpack.c.l.b16 %v1241
        %v1531 = vunpack.c.l.b16 %v1242
        %v1532 = vunpack.c.h.b16 %v1242
        %v1533 = vunpack.c.l.b16 %v1243
        %v1534 = vunpack.c.l.b16 %v1244
        %v1535 = vunpack.c.h.b16 %v1244
        %v1536 = vunpack.c.l.b16 %v1245
        %v1537 = vunpack.c.l.b16 %v1246
        %v1538 = vunpack.c.h.b16 %v1246
        %v1539 = vunpack.c.l.b16 %v1247
        %v1540 = vunpack.c.l.b16 %v1248
        %v1541 = vunpack.c.h.b16 %v1248
        %v1542 = vunpack.c.l.b16 %v1249
        %v1543 = vunpack.c.l.b16 %v1250
        %v1544 = vunpack.c.h.b16 %v1250
        %v1545 = vunpack.c.l.b16 %v1251
        %v1546 = vunpack.c.l.b16 %v1252
        %v1547 = vunpack.c.h.b16 %v1252
        %v1548 = vunpack.c.l.b16 %v1253
        %v1549 = vunpack.c.l.b16 %v1254
        %v1550 = vunpack.c.h.b16 %v1254
        %v1551 = vunpack.c.l.b16 %v1255
        %v1552 = vunpack.c.l.b16 %v1256
        %v1553 = vunpack.c.h.b16 %v1256
        %v1554 = vunpack.c.l.b16 %v1257
        %v1555 = vunpack.c.l.b16 %v1258
        %v1556 = vunpack.c.h.b16 %v1258
        %v1557 = vunpack.c.l.b16 %v1259
        %v1558 = vunpack.c.l.b16 %v1260
        %v1559 = vunpack.c.h.b16 %v1260
        %v1560 = vunpack.c.l.b16 %v1261
        %v1561 = vunpack.c.l.b16 %v1262
        %v1562 = vunpack.c.h.b16 %v1262
        %v1563 = vunpack.c.l.b16 %v1263
        %v1564 = vunpack.c.l.b16 %v1264
        %v1565 = vunpack.c.h.b16 %v1264
        %v1566 = vunpack.c.l.b16 %v1265
        %v1567 = vunpack.c.l.b16 %v1266
        %v1568 = vunpack.c.h.b16 %v1266
        %v1569 = vunpack.c.l.b16 %v1267
        %v1570 = vunpack.c.l.b16 %v1268
        %v1571 = vunpack.c.h.b16 %v1268
        %v1572 = vunpack.c.l.b16 %v1269
        %v1573 = vunpack.c.l.b16 %v1270
        %v1574 = vunpack.c.h.b16 %v1270
        %v1575 = vunpack.c.l.b16 %v1271
        %v1576 = vunpack.c.l.b16 %v1272
        %v1577 = vunpack.c.h.b16 %v1272
        %v1578 = vunpack.c.l.b16 %v1273
        %v1579 = vunpack.c.l.b16 %v1274
        %v1580 = vunpack.c.h.b16 %v1274
        %v1581 = vunpack.c.l.b16 %v1275
        %v1582 = vunpack.c.l.b16 %v1276
        %v1583 = vunpack.c.h.b16 %v1276
        %v1584 = vunpack.c.l.b16 %v1277
        %v1585 = vunpack.c.l.b16 %v1278
        %v1586 = vunpack.c.h.b16 %v1278
        %v1587 = vunpack.c.l.b16 %v1279
        %v1588 = vunpack.c.l.b16 %v1280
        %v1589 = vunpack.c.h.b16 %v1280
        %v1590 = vunpack.c.l.b16 %v1281
        %v1591 = vunpack.c.l.b16 %v1282
        %v1592 = vunpack.c.h.b16 %v1282
        %v1593 = vunpack.c.l.b16 %v1283
        %v1594 = vunpack.c.l.b16 %v1284
        %v1595 = vunpack.c.h.b16 %v1284
        %v1596 = vunpack.c.l.b16 %v1285
        %v1597 = vunpack.c.l.b16 %v1286
        %v1598 = vunpack.c.h.b16 %v1286
        %v1599 = vunpack.c.l.b16 %v1287
        %v1600 = vunpack.c.l.b16 %v1288
        %v1601 = vunpack.c.h.b16 %v1288
        %v1602 = vunpack.c.l.b16 %v1289
        %v1603 = vunpack.c.l.b16 %v1290
        %v1604 = vunpack.c.h.b16 %v1290
        %v1605 = vunpack.c.l.b16 %v1291
        %v1606 = vunpack.c.l.b16 %v1292
        %v1607 = vunpack.c.h.b16 %v1292
        %v1608 = vunpack.c.l.b16 %v1293
        %v1609 = vunpack.c.l.b16 %v1294
        %v1610 = vunpack.c.h.b16 %v1294
        %v1611 = vunpack.c.l.b16 %v1295
        %v1612 = vunpack.c.l.b16 %v1296
        %v1613 = vunpack.c.h.b16 %v1296
        %v1614 = vunpack.c.l.b16 %v1297
        %v1615 = vunpack.c.l.b16 %v1298
        %v1616 = vunpack.c.h.b16 %v1298
        %v1617 = vunpack.c.l.b16 %v1299
        %v1618 = vunpack.c.l.b16 %v1300
        %v1619 = vunpack.c.h.b16 %v1300
        %v1620 = vunpack.c.l.b16 %v1301
        %v1621 = vunpack.c.l.b16 %v1302
        %v1622 = vunpack.c.h.b16 %v1302
        %v1623 = vunpack.c.l.b16 %v1303
        %v1624 = vpack.c.b16 %v1435, %v1432
        %v1625 = vpack.c.b16 %v1436, %v1433
        %v1626 = vpack.c.b16 %v1437, %v1434
        %v1627 = vpack.c.b16 %v1441, %v1438
        %v1628 = vpack.c.b16 %v1442, %v1439
        %v1629 = vpack.c.b16 %v1443, %v1440
        %v1630 = vpack.c.b16 %v1447, %v1444
        %v1631 = vpack.c.b16 %v1448, %v1445
        %v1632 = vpack.c.b16 %v1449, %v1446
        %v1633 = vpack.c.b16 %v1453, %v1450
        %v1634 = vpack.c.b16 %v1454, %v1451
        %v1635 = vpack.c.b16 %v1455, %v1452
        %v1636 = vpack.c.b16 %v1459, %v1456
        %v1637 = vpack.c.b16 %v1460, %v1457
        %v1638 = vpack.c.b16 %v1461, %v1458
        %v1639 = vpack.c.b16 %v1465, %v1462
        %v1640 = vpack.c.b16 %v1466, %v1463
        %v1641 = vpack.c.b16 %v1467, %v1464
        %v1642 = vpack.c.b16 %v1471, %v1468
        %v1643 = vpack.c.b16 %v1472, %v1469
        %v1644 = vpack.c.b16 %v1473, %v1470
        %v1645 = vpack.c.b16 %v1477, %v1474
        %v1646 = vpack.c.b16 %v1478, %v1475
        %v1647 = vpack.c.b16 %v1479, %v1476
        %v1648 = vpack.c.b16 %v1483, %v1480
        %v1649 = vpack.c.b16 %v1484, %v1481
        %v1650 = vpack.c.b16 %v1485, %v1482
        %v1651 = vpack.c.b16 %v1489, %v1486
        %v1652 = vpack.c.b16 %v1490, %v1487
        %v1653 = vpack.c.b16 %v1491, %v1488
        %v1654 = vpack.c.b16 %v1495, %v1492
        %v1655 = vpack.c.b16 %v1496, %v1493
        %v1656 = vpack.c.b16 %v1497, %v1494
        %v1657 = vpack.c.b16 %v1501, %v1498
        %v1658 = vpack.c.b16 %v1502, %v1499
        %v1659 = vpack.c.b16 %v1503, %v1500
        %v1660 = vpack.c.b16 %v1507, %v1504
        %v1661 = vpack.c.b16 %v1508, %v1505
        %v1662 = vpack.c.b16 %v1509, %v1506
        %v1663 = vpack.c.b16 %v1513, %v1510
        %v1664 = vpack.c.b16 %v1514, %v1511
        %v1665 = vpack.c.b16 %v1515, %v1512
        %v1666 = vpack.c.b16 %v1519, %v1516
        %v1667 = vpack.c.b16 %v1520, %v1517
        %v1668 = vpack.c.b16 %v1521, %v1518
        %v1669 = vpack.c.b16 %v1525, %v1522
        %v1670 = vpack.c.b16 %v1526, %v1523
        %v1671 = vpack.c.b16 %v1527, %v1524
        %v1672 = vpack.c.b16 %v1531, %v1528
        %v1673 = vpack.c.b16 %v1532, %v1529
        %v1674 = vpack.c.b16 %v1533, %v1530
        %v1675 = vpack.c.b16 %v1537, %v1534
        %v1676 = vpack.c.b16 %v1538, %v1535
        %v1677 = vpack.c.b16 %v1539, %v1536
        %v1678 = vpack.c.b16 %v1543, %v1540
        %v1679 = vpack.c.b16 %v1544, %v1541
        %v1680 = vpack.c.b16 %v1545, %v1542
        %v1681 = vpack.c.b16 %v1549, %v1546
        %v1682 = vpack.c.b16 %v1550, %v1547
        %v1683 = vpack.c.b16 %v1551, %v1548
        %v1684 = vpack.c.b16 %v1555, %v1552
        %v1685 = vpack.c.b16 %v1556, %v1553
        %v1686 = vpack.c.b16 %v1557, %v1554
        %v1687 = vpack.c.b16 %v1561, %v1558
        %v1688 = vpack.c.b16 %v1562, %v1559
        %v1689 = vpack.c.b16 %v1563, %v1560
        %v1690 = vpack.c.b16 %v1567, %v1564
        %v1691 = vpack.c.b16 %v1568, %v1565
        %v1692 = vpack.c.b16 %v1569, %v1566
        %v1693 = vpack.c.b16 %v1573, %v1570
        %v1694 = vpack.c.b16 %v1574, %v1571
        %v1695 = vpack.c.b16 %v1575, %v1572
        %v1696 = vpack.c.b16 %v1579, %v1576
        %v1697 = vpack.c.b16 %v1580, %v1577
        %v1698 = vpack.c.b16 %v1581, %v1578
        %v1699 = vpack.c.b16 %v1585, %v1582
        %v1700 = vpack.c.b16 %v1586, %v1583
        %v1701 = vpack.c.b16 %v1587, %v1584
        %v1702 = vpack.c.b16 %v1591, %v1588
        %v1703 = vpack.c.b16 %v1592, %v1589
        %v1704 = vpack.c.b16 %v1593, %v1590
        %v1705 = vpack.c.b16 %v1597, %v1594
        %v1706 = vpack.c.b16 %v1598, %v1595
        %v1707 = vpack.c.b16 %v1599, %v1596
        %v1708 = vpack.c.b16 %v1603, %v1600
        %v1709 = vpack.c.b16 %v1604, %v1601
        %v1710 = vpack.c.b16 %v1605, %v1602
        %v1711 = vpack.c.b16 %v1609, %v1606
        %v1712 = vpack.c.b16 %v1610, %v1607
        %v1713 = vpack.c.b16 %v1611, %v1608
        %v1714 = vpack.c.b16 %v1615, %v1612
        %v1715 = vpack.c.b16 %v1616, %v1613
        %v1716 = vpack.c.b16 %v1617, %v1614
        %v1717 = vpack.c.b16 %v1621, %v1618
        %v1718 = vpack.c.b16 %v1622, %v1619
        %v1719 = vpack.c.b16 %v1623, %v1620
        %1816 = vmatpush.bf16.msra.mxu0 %v1645
        %1817 = vmatpush.bf16.msra.mxu0 %v1642
        %1818 = vmatpush.bf16.msra.mxu0 %v1639
        %1819 = vmatpush.bf16.msra.mxu0 %v1636
        %1820 = vmatpush.bf16.msra.mxu0 %v1633
        %1821 = vmatpush.bf16.msra.mxu0 %v1630
        %1822 = vmatpush.bf16.msra.mxu0 %v1627
        %1823 = vmatpush.bf16.msra.mxu0 %v1624
        %1824 = vmatmul.bf16.gmra.mxu0 %v1172
        %v1825 = vpop.f32.mrf.mxu0
        %v1826 = vadd.f32 0.0, %v1825
        %v1827 = vpop.f32.mrf.mxu0
        %v1828 = vadd.f32 0.0, %v1827
        %1829 = vdwg.mxu0
        %1830 = vmatpush.bf16.msra.mxu0 %v1669
        %1831 = vmatpush.bf16.msra.mxu0 %v1666
        %1832 = vmatpush.bf16.msra.mxu0 %v1663
        %1833 = vmatpush.bf16.msra.mxu0 %v1660
        %1834 = vmatpush.bf16.msra.mxu0 %v1657
        %1835 = vmatpush.bf16.msra.mxu0 %v1654
        %1836 = vmatpush.bf16.msra.mxu0 %v1651
        %1837 = vmatpush.bf16.msra.mxu0 %v1648
        %1838 = vmatmul.bf16.gmra.mxu0 %v1173
        %v1839 = vpop.f32.mrf.mxu0
        %v1840 = vadd.f32 %v1826, %v1839
        %v1841 = vpop.f32.mrf.mxu0
        %v1842 = vadd.f32 %v1828, %v1841
        %1843 = vdwg.mxu0
        %1844 = vmatpush.bf16.msra.mxu0 %v1693
        %1845 = vmatpush.bf16.msra.mxu0 %v1690
        %1846 = vmatpush.bf16.msra.mxu0 %v1687
        %1847 = vmatpush.bf16.msra.mxu0 %v1684
        %1848 = vmatpush.bf16.msra.mxu0 %v1681
        %1849 = vmatpush.bf16.msra.mxu0 %v1678
        %1850 = vmatpush.bf16.msra.mxu0 %v1675
        %1851 = vmatpush.bf16.msra.mxu0 %v1672
        %1852 = vmatmul.bf16.gmra.mxu0 %v1174
        %v1853 = vpop.f32.mrf.mxu0
        %v1854 = vadd.f32 %v1840, %v1853
        %v1855 = vpop.f32.mrf.mxu0
        %v1856 = vadd.f32 %v1842, %v1855
        %1857 = vdwg.mxu0
        %1858 = vmatpush.bf16.msra.mxu0 %v1717
        %1859 = vmatpush.bf16.msra.mxu0 %v1714
        %1860 = vmatpush.bf16.msra.mxu0 %v1711
        %1861 = vmatpush.bf16.msra.mxu0 %v1708
        %1862 = vmatpush.bf16.msra.mxu0 %v1705
        %1863 = vmatpush.bf16.msra.mxu0 %v1702
        %1864 = vmatpush.bf16.msra.mxu0 %v1699
        %1865 = vmatpush.bf16.msra.mxu0 %v1696
        %1866 = vmatmul.bf16.gmra.mxu0 %v1175
        %v1867 = vpop.f32.mrf.mxu0
        %v1868 = vadd.f32 %v1854, %v1867
        %v1869 = vpop.f32.mrf.mxu0
        %v1870 = vadd.f32 %v1856, %v1869
        %1871 = vdwg.mxu0
        %1872 = vmatpush.bf16.msra.mxu0 %v1646
        %1873 = vmatpush.bf16.msra.mxu0 %v1643
        %1874 = vmatpush.bf16.msra.mxu0 %v1640
        %1875 = vmatpush.bf16.msra.mxu0 %v1637
        %1876 = vmatpush.bf16.msra.mxu0 %v1634
        %1877 = vmatpush.bf16.msra.mxu0 %v1631
        %1878 = vmatpush.bf16.msra.mxu0 %v1628
        %1879 = vmatpush.bf16.msra.mxu0 %v1625
        %1880 = vmatmul.bf16.gmra.mxu0 %v1172
        %v1881 = vpop.f32.mrf.mxu0
        %v1882 = vadd.f32 0.0, %v1881
        %v1883 = vpop.f32.mrf.mxu0
        %v1884 = vadd.f32 0.0, %v1883
        %1885 = vdwg.mxu0
        %1886 = vmatpush.bf16.msra.mxu0 %v1670
        %1887 = vmatpush.bf16.msra.mxu0 %v1667
        %1888 = vmatpush.bf16.msra.mxu0 %v1664
        %1889 = vmatpush.bf16.msra.mxu0 %v1661
        %1890 = vmatpush.bf16.msra.mxu0 %v1658
        %1891 = vmatpush.bf16.msra.mxu0 %v1655
        %1892 = vmatpush.bf16.msra.mxu0 %v1652
        %1893 = vmatpush.bf16.msra.mxu0 %v1649
        %1894 = vmatmul.bf16.gmra.mxu0 %v1173
        %v1895 = vpop.f32.mrf.mxu0
        %v1896 = vadd.f32 %v1882, %v1895
        %v1897 = vpop.f32.mrf.mxu0
        %v1898 = vadd.f32 %v1884, %v1897
        %1899 = vdwg.mxu0
        %1900 = vmatpush.bf16.msra.mxu0 %v1694
        %1901 = vmatpush.bf16.msra.mxu0 %v1691
        %1902 = vmatpush.bf16.msra.mxu0 %v1688
        %1903 = vmatpush.bf16.msra.mxu0 %v1685
        %1904 = vmatpush.bf16.msra.mxu0 %v1682
        %1905 = vmatpush.bf16.msra.mxu0 %v1679
        %1906 = vmatpush.bf16.msra.mxu0 %v1676
        %1907 = vmatpush.bf16.msra.mxu0 %v1673
        %1908 = vmatmul.bf16.gmra.mxu0 %v1174
        %v1909 = vpop.f32.mrf.mxu0
        %v1910 = vadd.f32 %v1896, %v1909
        %v1911 = vpop.f32.mrf.mxu0
        %v1912 = vadd.f32 %v1898, %v1911
        %1913 = vdwg.mxu0
        %1914 = vmatpush.bf16.msra.mxu0 %v1718
        %1915 = vmatpush.bf16.msra.mxu0 %v1715
        %1916 = vmatpush.bf16.msra.mxu0 %v1712
        %1917 = vmatpush.bf16.msra.mxu0 %v1709
        %1918 = vmatpush.bf16.msra.mxu0 %v1706
        %1919 = vmatpush.bf16.msra.mxu0 %v1703
        %1920 = vmatpush.bf16.msra.mxu0 %v1700
        %1921 = vmatpush.bf16.msra.mxu0 %v1697
        %1922 = vmatmul.bf16.gmra.mxu0 %v1175
        %v1923 = vpop.f32.mrf.mxu0
        %v1924 = vadd.f32 %v1910, %v1923
        %v1925 = vpop.f32.mrf.mxu0
        %v1926 = vadd.f32 %v1912, %v1925
        %1927 = vdwg.mxu0
        %1928 = vmatpush.bf16.msra.mxu0 %v1647
        %1929 = vmatpush.bf16.msra.mxu0 %v1644
        %1930 = vmatpush.bf16.msra.mxu0 %v1641
        %1931 = vmatpush.bf16.msra.mxu0 %v1638
        %1932 = vmatpush.bf16.msra.mxu0 %v1635
        %1933 = vmatpush.bf16.msra.mxu0 %v1632
        %1934 = vmatpush.bf16.msra.mxu0 %v1629
        %1935 = vmatpush.bf16.msra.mxu0 %v1626
        %1936 = vmatmul.bf16.gmra.mxu0 %v1172
        %v1937 = vpop.f32.mrf.mxu0
        %v1938 = vadd.f32 0.0, %v1937
        %v1939 = vpop.f32.mrf.mxu0
        %v1940 = vadd.f32 0.0, %v1939
        %1941 = vdwg.mxu0
        %1942 = vmatpush.bf16.msra.mxu0 %v1671
        %1943 = vmatpush.bf16.msra.mxu0 %v1668
        %1944 = vmatpush.bf16.msra.mxu0 %v1665
        %1945 = vmatpush.bf16.msra.mxu0 %v1662
        %1946 = vmatpush.bf16.msra.mxu0 %v1659
        %1947 = vmatpush.bf16.msra.mxu0 %v1656
        %1948 = vmatpush.bf16.msra.mxu0 %v1653
        %1949 = vmatpush.bf16.msra.mxu0 %v1650
        %1950 = vmatmul.bf16.gmra.mxu0 %v1173
        %v1951 = vpop.f32.mrf.mxu0
        %v1952 = vadd.f32 %v1938, %v1951
        %v1953 = vpop.f32.mrf.mxu0
        %v1954 = vadd.f32 %v1940, %v1953
        %1955 = vdwg.mxu0
        %1956 = vmatpush.bf16.msra.mxu0 %v1695
        %1957 = vmatpush.bf16.msra.mxu0 %v1692
        %1958 = vmatpush.bf16.msra.mxu0 %v1689
        %1959 = vmatpush.bf16.msra.mxu0 %v1686
        %1960 = vmatpush.bf16.msra.mxu0 %v1683
        %1961 = vmatpush.bf16.msra.mxu0 %v1680
        %1962 = vmatpush.bf16.msra.mxu0 %v1677
        %1963 = vmatpush.bf16.msra.mxu0 %v1674
        %1964 = vmatmul.bf16.gmra.mxu0 %v1174
        %v1965 = vpop.f32.mrf.mxu0
        %v1966 = vadd.f32 %v1952, %v1965
        %v1967 = vpop.f32.mrf.mxu0
        %v1968 = vadd.f32 %v1954, %v1967
        %1969 = vdwg.mxu0
        %1970 = vmatpush.bf16.msra.mxu0 %v1719
        %1971 = vmatpush.bf16.msra.mxu0 %v1716
        %1972 = vmatpush.bf16.msra.mxu0 %v1713
        %1973 = vmatpush.bf16.msra.mxu0 %v1710
        %1974 = vmatpush.bf16.msra.mxu0 %v1707
        %1975 = vmatpush.bf16.msra.mxu0 %v1704
        %1976 = vmatpush.bf16.msra.mxu0 %v1701
        %1977 = vmatpush.bf16.msra.mxu0 %v1698
        %1978 = vmatmul.bf16.gmra.mxu0 %v1175
        %v1979 = vpop.f32.mrf.mxu0
        %v1980 = vadd.f32 %v1966, %v1979
        %v1981 = vpop.f32.mrf.mxu0
        %v1982 = vadd.f32 %v1968, %v1981
        %1983 = vdwg.mxu0
        %v1984 = vadd.f32 %v1166, %v1868
        %v1985 = vadd.f32 %v1167, %v1924
        %v1986 = vadd.f32 %v1168, %v1980
        %v1987 = vadd.f32 %v1169, %v1870
        %v1988 = vadd.f32 %v1170, %v1926
        %v1989 = vadd.f32 %v1171, %v1982
        %1990 = vst [vmem:[#allocation2] sm:$0xff] %v1984
        %1991 = vst [vmem:[#allocation2 + $0x8] sm:$0xff] %v1985
        %1992 = vst [vmem:[#allocation2 + $0x10] sm:$0xff] %v1986
        %1993 = vst [vmem:[#allocation2 + $0x18] sm:$0xff] %v1987
        %1994 = vst [vmem:[#allocation2 + $0x20] sm:$0xff] %v1988
        %1995 = vst [vmem:[#allocation2 + $0x28] sm:$0xff] %v1989
        %p1996 = scmp.eq.s32.totalorder %s29, 2
        // Predicated region
        $region65: #{tpu_custom_call.1} parent=39 // pred_check
          %p1997 = pneg %p1996
        $region66: #{tpu_custom_call.1} parent=39 // pred_check_branch
          %1999 = sbr.rel (%p1997) target = $region68
        $region67: #{tpu_custom_call.1} parent=39 // pred_region
          %v2000 = vld [vmem:[#allocation2] sm:$0xff]
          %v2001 = vld [vmem:[#allocation2 + $0x8] sm:$0xff]
          %v2002 = vld [vmem:[#allocation2 + $0x10] sm:$0xff]
          %v2003 = vld [vmem:[#allocation2 + $0x18] sm:$0xff]
          %v2004 = vld [vmem:[#allocation2 + $0x20] sm:$0xff]
          %v2005 = vld [vmem:[#allocation2 + $0x28] sm:$0xff]
          %v2006 = vld [vmem:[#allocation11] sm:$0x7]
          %v2008 = vperm.slane %v2006, 0
          %v2009 = vperm.slane %v2006, 1
          %v2010 = vperm.slane %v2006, 2
          %v2014 = vadd.f32 %v2000, %v2008
          %v2015 = vadd.f32 %v2001, %v2009
          %v2016 = vadd.f32 %v2002, %v2010
          %v2017 = vadd.f32 %v2003, %v2008
          %v2018 = vadd.f32 %v2004, %v2009
          %v2019 = vadd.f32 %v2005, %v2010
          %2020 = vst [vmem:[#allocation12] sm:$0xff] %v2014
          %2021 = vst [vmem:[#allocation12 + $0x8] sm:$0xff] %v2015
          %2022 = vst [vmem:[#allocation12 + $0x10] sm:$0xff] %v2016
          %2023 = vst [vmem:[#allocation12 + $0x18] sm:$0xff] %v2017
          %2024 = vst [vmem:[#allocation12 + $0x20] sm:$0xff] %v2018
          %2025 = vst [vmem:[#allocation12 + $0x28] sm:$0xff] %v2019
        $region68: #{tpu_custom_call.1} parent=39 // pred_fallthru
          _
        // Predicated region
        $region69: #{tpu_custom_call.1} parent=39 // pred_check
          %p2026 = pneg %p179
        $region70: #{tpu_custom_call.1} parent=39 // pred_check_branch
          %2028 = sbr.rel (%p2026) target = $region72
        $region71: #{tpu_custom_call.1} parent=39 // pred_region
          %s2029 = smul.u32 2, %s28
          %2031 = vsyncadd [#allocation5], 0
          %s2032 = smul.addr %s2029, 3
          %s2033 = smul.addr %s2032, 8
          %s2034 = scalar_lea.hbm %s5, %s2033
          %s2035 = sshll.u32 [#allocation12], 4
          %s2036 = int_to_ptr.vmem [resolvable:$true] %s2035
          %s2037 = sshll.u32 %s2034, 4
          %s2038 = int_to_ptr.hbm [resolvable:$true] %s2037
          %2043 = dma.vmem_to_hbm [thread:$0]  %s2036, 768, %s2038, [#allocation5], 384, 384, 24
        $region72: #{tpu_custom_call.1} parent=39 // pred_fallthru
          _
        // Predicated region
        $region73: #{tpu_custom_call.1} parent=39 // pred_check
          %p2044 = pneg %p179
        $region74: #{tpu_custom_call.1} parent=39 // pred_check_branch
          %2046 = sbr.rel (%p2044) target = $region76
        $region75: #{tpu_custom_call.1} parent=39 // pred_region
          %2048 = dma.done [#allocation5], 768
        $region76: #{tpu_custom_call.1} parent=39 // pred_fallthru
          _
      $region40: #{tpu_custom_call.1} parent=5 // pred_fallthru
        _
      %p2049 = scmp.le.s32.totalorder 2, %s19
      // Predicated region
      $region77: #{tpu_custom_call.1} parent=5 // pred_check
        %p2050 = pneg %p2049
      $region78: #{tpu_custom_call.1} parent=5 // pred_check_branch
        %2052 = sbr.rel (%p2050) target = $region80
      $region79: #{tpu_custom_call.1} parent=5 // pred_region
        %s2053 = ssub.s32 %s19, 2
      $region80: #{tpu_custom_call.1} parent=5 // pred_fallthru
        _
    $region6: #{tpu_custom_call.1} parent=1 // loop_footer
      %s23 = sadd.s32 1, %s19
    $region7: #{tpu_custom_call.1} parent=1 // loop_footer_branch
      %18 = sbr.rel target = $region3
    $region8: #{tpu_custom_call.1} parent=1 // loop_exit
      _
    %2054 = vsyncpa [#allocation4], 1
    %s2055 = scalar_lea.sflag [#allocation4], 1
    %2056 = vsyncpa %s2055, 1
    %2057 = vsyncpa [#allocation7], 1
    %s2058 = scalar_lea.sflag [#allocation7], 1
    %2059 = vsyncpa %s2058, 1
    %2060 = vsyncpa [#allocation10], 1
    %s2061 = scalar_lea.sflag [#allocation10], 1
    %2062 = vsyncpa %s2061, 1
    %2063 = vsyncpa [#allocation5], 1
    %s2064 = scalar_lea.sflag [#allocation5], 1
    %2065 = vsyncpa %s2064, 1

</llo_original>
